<compile_context>
chip_gen: v7x
topology: tpu7x:2x2x1
jax: 0.10.0
libtpu: 0.0.40
codegen_flags: <defaults>
</compile_context>

<pallas_src>
import functools

import jax
import jax.numpy as jnp
from jax.experimental import pallas as pl
from jax.experimental.pallas import tpu as pltpu

_INV_SQRT2 = 0.7071067811865476


def _erf(x, approx_recip):
    # Abramowitz & Stegun 7.1.26 rational approximation, |abs err| <= 1.5e-7.
    # exp() runs on the EUP; with approx_recip the 1/(1+p*|x|) also moves to the EUP.
    a1, a2, a3, a4, a5 = (0.254829592, -0.284496736, 1.421413741,
                          -1.453152027, 1.061405429)
    p = 0.3275911
    s = jnp.where(x >= 0.0, 1.0, -1.0)
    ax = jnp.abs(x)
    d = 1.0 + p * ax
    if approx_recip:
        t = pl.reciprocal(d, approx=True)   # EUP vrcp — frees the VALU slot
    else:
        t = 1.0 / d
    poly = ((((a5 * t + a4) * t + a3) * t + a2) * t + a1) * t
    return s * (1.0 - poly * jnp.exp(-ax * ax))


def _gelu_exact(x, approx_recip):
    # torch.nn.GELU() default: 0.5 * x * (1 + erf(x / sqrt(2)))
    return 0.5 * x * (1.0 + _erf(x * _INV_SQRT2, approx_recip))


def projection_head_kernel(x_ref, w1_ref, b1_ref, w2_ref, b2_ref,
                           g_ref, beta_ref, o_ref, *, approx_recip):
    # projection: Linear(E -> P). Operands in their storage dtype (bf16 by default),
    # f32 accumulation on the MXU.
    projected = jnp.dot(x_ref[...], w1_ref[...],
                        preferred_element_type=jnp.float32) + b1_ref[...]

    # exact (erf) GELU in f32
    h = _gelu_exact(projected, approx_recip)

    # fc: Linear(P -> P); cast the activation back to the matmul dtype for the MXU.
    y = jnp.dot(h.astype(w2_ref.dtype), w2_ref[...],
                preferred_element_type=jnp.float32) + b2_ref[...]

    # dropout (eval mode) -> identity; residual add (f32)
    y = y + projected

    # LayerNorm over last dim (eps = 1e-5, affine), all in f32
    mean = jnp.mean(y, axis=-1, keepdims=True)
    var = jnp.mean((y - mean) ** 2, axis=-1, keepdims=True)
    y = (y - mean) * jax.lax.rsqrt(var + 1e-5)
    o_ref[...] = (y * g_ref[...] + beta_ref[...]).astype(o_ref.dtype)


def projection_head(x, w_proj, b_proj, w_fc, b_fc, ln_gamma, ln_beta, *,
                    tb=128, matmul_dtype=jnp.bfloat16,
                    single_buffer_weights=True):
    """x: [N, E]; w_proj: [E, P]; w_fc: [P, P]; biases/gamma/beta: [1, P].

    tb: row tile (multiple of 8; 128-512 recommended).
    matmul_dtype: operand dtype for the two MXU matmuls (f32 accumulation always).
    """
    N, E = x.shape
    P = w_proj.shape[1]
    out_dtype = x.dtype

    # Row tile: multiple of 8, no larger than (padded) N.
    tb = int(max(8, min(int(tb), ((N + 7) // 8) * 8)))
    tb = (tb // 8) * 8
    n_pad = pl.cdiv(N, tb) * tb

    mm_dtype = jnp.dtype(matmul_dtype)
    approx_recip = mm_dtype != jnp.dtype(jnp.float32)

    # Pre-cast MXU operands (halves weight DMA/VMEM when bf16). Biases / LN params stay f32.
    xp = x.astype(mm_dtype)
    if n_pad != N:
        xp = jnp.pad(xp, ((0, n_pad - N), (0, 0)))
    w1 = w_proj.astype(mm_dtype)
    w2 = w_fc.astype(mm_dtype)
    b1 = b_proj.astype(jnp.float32)
    b2 = b_fc.astype(jnp.float32)
    g = ln_gamma.astype(jnp.float32)
    beta = ln_beta.astype(jnp.float32)

    # Advisory cost estimate for the XLA scheduler.
    flops = 2 * n_pad * E * P + 2 * n_pad * P * P
    bytes_accessed = (xp.size * xp.dtype.itemsize
                      + (w1.size + w2.size) * mm_dtype.itemsize
                      + (b1.size + b2.size + g.size + beta.size) * 4
                      + n_pad * P * jnp.dtype(out_dtype).itemsize)
    cost = pl.CostEstimate(flops=flops, transcendentals=n_pad * P,
                           bytes_accessed=bytes_accessed)

    # Only raise the scoped-VMEM limit when the estimate actually needs it.
    n_wbuf = 1 if single_buffer_weights else 2
    vmem_est = (2 * tb * E * mm_dtype.itemsize                      # x tile (double buffered)
                + 2 * tb * P * jnp.dtype(out_dtype).itemsize        # out tile (double buffered)
                + n_wbuf * (E * P + P * P) * mm_dtype.itemsize      # weights
                + n_wbuf * 4 * P * 4                                # biases / gamma / beta
                + (1 << 20))
    vmem_limit = None if vmem_est <= (32 << 20) else int(min(vmem_est * 5 // 4, 112 << 20))

    kernel = functools.partial(projection_head_kernel, approx_recip=approx_recip)
    grid = (n_pad // tb,)

    def _build(single_buffer):
        const_kwargs = {}
        if single_buffer:
            # Constant index_map -> no need to double-buffer; halves weight VMEM.
            const_kwargs = dict(pipeline_mode=pl.Buffered(1))
        in_specs = [
            pl.BlockSpec((tb, E), lambda i: (i, 0)),                   # x rows
            pl.BlockSpec((E, P), lambda i: (0, 0), **const_kwargs),    # W_proj (full)
            pl.BlockSpec((1, P), lambda i: (0, 0), **const_kwargs),    # b_proj
            pl.BlockSpec((P, P), lambda i: (0, 0), **const_kwargs),    # W_fc (full)
            pl.BlockSpec((1, P), lambda i: (0, 0), **const_kwargs),    # b_fc
            pl.BlockSpec((1, P), lambda i: (0, 0), **const_kwargs),    # LN gamma
            pl.BlockSpec((1, P), lambda i: (0, 0), **const_kwargs),    # LN beta
        ]
        return pl.pallas_call(
            kernel,
            out_shape=jax.ShapeDtypeStruct((n_pad, P), out_dtype),
            grid_spec=pltpu.PrefetchScalarGridSpec(
                num_scalar_prefetch=0,
                grid=grid,
                in_specs=in_specs,
                out_specs=pl.BlockSpec((tb, P), lambda i: (i, 0)),
            ),
            compiler_params=pltpu.CompilerParams(
                dimension_semantics=("parallel",),
                vmem_limit_bytes=vmem_limit,
            ),
            cost_estimate=cost,
        )

    args = (xp, w1, b1, w2, b2, g, beta)
    if single_buffer_weights:
        try:
            out = _build(True)(*args)
        except Exception:
            # Fallback if this JAX version rejects pl.Buffered(1) on a BlockSpec.
            out = _build(False)(*args)
    else:
        out = _build(False)(*args)

    return out[:N] if n_pad != N else out


def reference(x, w_proj, b_proj, w_fc, b_fc, ln_gamma, ln_beta):
    projected = x @ w_proj + b_proj
    h = jax.nn.gelu(projected, approximate=False)
    y = h @ w_fc + b_fc
    y = y + projected
    mean = jnp.mean(y, axis=-1, keepdims=True)
    var = jnp.mean((y - mean) ** 2, axis=-1, keepdims=True)
    y = (y - mean) * jax.lax.rsqrt(var + 1e-5)
    return y * ln_gamma + ln_beta


if __name__ == "__main__":
    # Small-but-representative shapes for the module's <=1024-projection branch.
    N = 256          # rows (2-step grid at tb=128 -> both v7x TCs get work)
    E = 64           # embedding_dim
    P = 128          # projection_dim (<= 1024 -> single-projection branch)

    key = jax.random.PRNGKey(0)
    kx, k1w, k1b, k2w, k2b = jax.random.split(key, 5)

    x = jax.random.normal(kx, (N, E), dtype=jnp.float32)

    # PyTorch nn.Linear default init: U(-1/sqrt(fan_in), 1/sqrt(fan_in)).
    k_proj = 1.0 / jnp.sqrt(jnp.float32(E))
    w_proj = jax.random.uniform(k1w, (E, P), jnp.float32, -k_proj, k_proj)
    b_proj = jax.random.uniform(k1b, (1, P), jnp.float32, -k_proj, k_proj)

    k_fc = 1.0 / jnp.sqrt(jnp.float32(P))
    w_fc = jax.random.uniform(k2w, (P, P), jnp.float32, -k_fc, k_fc)
    b_fc = jax.random.uniform(k2b, (1, P), jnp.float32, -k_fc, k_fc)

    # nn.LayerNorm default init: weight = 1, bias = 0.
    ln_gamma = jnp.ones((1, P), jnp.float32)
    ln_beta = jnp.zeros((1, P), jnp.float32)

    ref = reference(x, w_proj, b_proj, w_fc, b_fc, ln_gamma, ln_beta)

    # 1) f32-matmul path: tight numerical check against the reference.
    out_f32 = projection_head(x, w_proj, b_proj, w_fc, b_fc, ln_gamma, ln_beta,
                              tb=128, matmul_dtype=jnp.float32)
    out_f32 = jax.block_until_ready(out_f32)
    assert out_f32.shape == (N, P)
    assert bool(jnp.all(jnp.isfinite(out_f32)))
    assert bool(jnp.allclose(out_f32, ref, rtol=1e-3, atol=1e-3)), (
        float(jnp.max(jnp.abs(out_f32 - ref))))

    # 2) default bf16-operand / f32-accumulate path: looser check (bf16 operand rounding).
    out_bf16 = projection_head(x, w_proj, b_proj, w_fc, b_fc, ln_gamma, ln_beta, tb=128)
    out_bf16 = jax.block_until_ready(out_bf16)
    assert out_bf16.shape == (N, P)
    assert bool(jnp.all(jnp.isfinite(out_bf16)))
    assert bool(jnp.allclose(out_bf16, ref, rtol=5e-2, atol=5e-2)), (
        float(jnp.max(jnp.abs(out_bf16 - ref))))

    print("KERNEL_OK")
</pallas_src>

<mosaic_0001>
module attributes {stable_mosaic.version = 11 : i64} {
  func.func @projection_head_kernel(%arg0: i32, %arg1: memref<128x64xf32, #tpu.memory_space<vmem>>, %arg2: memref<64x128xf32, #tpu.memory_space<vmem>>, %arg3: memref<1x128xf32, #tpu.memory_space<vmem>>, %arg4: memref<128x128xf32, #tpu.memory_space<vmem>>, %arg5: memref<1x128xf32, #tpu.memory_space<vmem>>, %arg6: memref<1x128xf32, #tpu.memory_space<vmem>>, %arg7: memref<1x128xf32, #tpu.memory_space<vmem>>, %arg8: memref<128x128xf32, #tpu.memory_space<vmem>>) attributes {dimension_semantics = [#tpu.dimension_semantics<parallel>], iteration_bounds = array<i64: 2>, scalar_prefetch = 0 : i64, scratch_operands = 0 : i64, tpu.core_type = #tpu.core_type<tc>, window_params = [{transform_indices = @transform_0, window_bounds = array<i64: 128, 64>}, {pipeline_mode = #tpu.pipeline_mode<synchronous>, transform_indices = @transform_1, window_bounds = array<i64: 64, 128>}, {pipeline_mode = #tpu.pipeline_mode<synchronous>, transform_indices = @transform_2, window_bounds = array<i64: 1, 128>}, {pipeline_mode = #tpu.pipeline_mode<synchronous>, transform_indices = @transform_3, window_bounds = array<i64: 128, 128>}, {pipeline_mode = #tpu.pipeline_mode<synchronous>, transform_indices = @transform_4, window_bounds = array<i64: 1, 128>}, {pipeline_mode = #tpu.pipeline_mode<synchronous>, transform_indices = @transform_5, window_bounds = array<i64: 1, 128>}, {pipeline_mode = #tpu.pipeline_mode<synchronous>, transform_indices = @transform_6, window_bounds = array<i64: 1, 128>}, {transform_indices = @transform_7, window_bounds = array<i64: 128, 128>}]} {
    %c0 = arith.constant 0 : index
    %c0_0 = arith.constant 0 : index
    %0 = vector.load %arg1[%c0, %c0_0] : memref<128x64xf32, #tpu.memory_space<vmem>>, vector<128x64xf32>
    %c0_1 = arith.constant 0 : index
    %c0_2 = arith.constant 0 : index
    %1 = vector.load %arg2[%c0_1, %c0_2] : memref<64x128xf32, #tpu.memory_space<vmem>>, vector<64x128xf32>
    %cst = arith.constant dense<0.000000e+00> : vector<128x128xf32>
    %2 = tpu.matmul %0, %1, %cst {dimension_numbers = #tpu.dot_dimension_numbers<[1], [0], [0], [1], [0, 0, 1, 1], [], []>} : vector<128x64xf32>, vector<64x128xf32>, vector<128x128xf32> -> vector<128x128xf32>
    %c0_3 = arith.constant 0 : index
    %c0_4 = arith.constant 0 : index
    %3 = vector.load %arg3[%c0_3, %c0_4] : memref<1x128xf32, #tpu.memory_space<vmem>>, vector<1x128xf32>
    %4 = vector.broadcast %3 : vector<1x128xf32> to vector<128x128xf32>
    %5 = arith.addf %2, %4 : vector<128x128xf32>
    %cst_5 = arith.constant 5.000000e-01 : f32
    %6 = vector.broadcast %cst_5 : f32 to vector<128x128xf32>
    %7 = arith.mulf %6, %5 : vector<128x128xf32>
    %cst_6 = arith.constant 0.707106769 : f32
    %8 = vector.broadcast %cst_6 : f32 to vector<128x128xf32>
    %9 = arith.mulf %5, %8 : vector<128x128xf32>
    %cst_7 = arith.constant 0.000000e+00 : f32
    %10 = vector.broadcast %cst_7 : f32 to vector<128x128xf32>
    %11 = arith.cmpf oge, %9, %10 : vector<128x128xf32>
    %cst_8 = arith.constant 1.000000e+00 : f32
    %cst_9 = arith.constant -1.000000e+00 : f32
    %12 = vector.broadcast %cst_8 : f32 to vector<128x128xf32>
    %13 = vector.broadcast %cst_9 : f32 to vector<128x128xf32>
    %14 = arith.select %11, %12, %13 : vector<128x128xi1>, vector<128x128xf32>
    %15 = math.absf %9 : vector<128x128xf32>
    %cst_10 = arith.constant 0.327591091 : f32
    %16 = vector.broadcast %cst_10 : f32 to vector<128x128xf32>
    %17 = arith.mulf %16, %15 : vector<128x128xf32>
    %cst_11 = arith.constant 1.000000e+00 : f32
    %18 = vector.broadcast %cst_11 : f32 to vector<128x128xf32>
    %19 = arith.addf %18, %17 : vector<128x128xf32>
    %cst_12 = arith.constant 1.000000e+00 : f32
    %20 = vector.broadcast %cst_12 : f32 to vector<128x128xf32>
    %21 = arith.divf %20, %19 : vector<128x128xf32>
    %cst_13 = arith.constant 1.06140542 : f32
    %22 = vector.broadcast %cst_13 : f32 to vector<128x128xf32>
    %23 = arith.mulf %22, %21 : vector<128x128xf32>
    %cst_14 = arith.constant -1.45315206 : f32
    %24 = vector.broadcast %cst_14 : f32 to vector<128x128xf32>
    %25 = arith.addf %23, %24 : vector<128x128xf32>
    %26 = arith.mulf %25, %21 : vector<128x128xf32>
    %cst_15 = arith.constant 1.42141378 : f32
    %27 = vector.broadcast %cst_15 : f32 to vector<128x128xf32>
    %28 = arith.addf %26, %27 : vector<128x128xf32>
    %29 = arith.mulf %28, %21 : vector<128x128xf32>
    %cst_16 = arith.constant -0.284496725 : f32
    %30 = vector.broadcast %cst_16 : f32 to vector<128x128xf32>
    %31 = arith.addf %29, %30 : vector<128x128xf32>
    %32 = arith.mulf %31, %21 : vector<128x128xf32>
    %cst_17 = arith.constant 0.254829586 : f32
    %33 = vector.broadcast %cst_17 : f32 to vector<128x128xf32>
    %34 = arith.addf %32, %33 : vector<128x128xf32>
    %35 = arith.mulf %34, %21 : vector<128x128xf32>
    %cst_18 = arith.constant 0.000000e+00 : f32
    %36 = vector.broadcast %cst_18 : f32 to vector<128x128xf32>
    %37 = arith.subf %36, %15 : vector<128x128xf32>
    %38 = arith.mulf %37, %15 : vector<128x128xf32>
    %39 = math.exp %38 : vector<128x128xf32>
    %40 = arith.mulf %35, %39 : vector<128x128xf32>
    %cst_19 = arith.constant 1.000000e+00 : f32
    %41 = vector.broadcast %cst_19 : f32 to vector<128x128xf32>
    %42 = arith.subf %41, %40 : vector<128x128xf32>
    %43 = arith.mulf %14, %42 : vector<128x128xf32>
    %cst_20 = arith.constant 1.000000e+00 : f32
    %44 = vector.broadcast %cst_20 : f32 to vector<128x128xf32>
    %45 = arith.addf %44, %43 : vector<128x128xf32>
    %46 = arith.mulf %7, %45 : vector<128x128xf32>
    %c0_21 = arith.constant 0 : index
    %c0_22 = arith.constant 0 : index
    %47 = vector.load %arg4[%c0_21, %c0_22] : memref<128x128xf32, #tpu.memory_space<vmem>>, vector<128x128xf32>
    %cst_23 = arith.constant dense<0.000000e+00> : vector<128x128xf32>
    %48 = tpu.matmul %46, %47, %cst_23 {dimension_numbers = #tpu.dot_dimension_numbers<[1], [0], [0], [1], [0, 0, 1, 1], [], []>} : vector<128x128xf32>, vector<128x128xf32>, vector<128x128xf32> -> vector<128x128xf32>
    %c0_24 = arith.constant 0 : index
    %c0_25 = arith.constant 0 : index
    %49 = vector.load %arg5[%c0_24, %c0_25] : memref<1x128xf32, #tpu.memory_space<vmem>>, vector<1x128xf32>
    %50 = vector.broadcast %49 : vector<1x128xf32> to vector<128x128xf32>
    %51 = arith.addf %48, %50 : vector<128x128xf32>
    %52 = arith.addf %51, %5 : vector<128x128xf32>
    %cst_26 = arith.constant dense<0.000000e+00> : vector<128xf32>
    %53 = vector.multi_reduction <add>, %52, %cst_26 [1] : vector<128x128xf32> to vector<128xf32>
    %54 = vector.shape_cast %53 : vector<128xf32> to vector<128x1xf32>
    %cst_27 = arith.constant 1.280000e+02 : f32
    %55 = vector.broadcast %cst_27 : f32 to vector<128x1xf32>
    %56 = arith.divf %54, %55 : vector<128x1xf32>
    %57 = vector.broadcast %56 : vector<128x1xf32> to vector<128x128xf32>
    %58 = arith.subf %52, %57 : vector<128x128xf32>
    %59 = arith.mulf %58, %58 : vector<128x128xf32>
    %cst_28 = arith.constant dense<0.000000e+00> : vector<128xf32>
    %60 = vector.multi_reduction <add>, %59, %cst_28 [1] : vector<128x128xf32> to vector<128xf32>
    %61 = vector.shape_cast %60 : vector<128xf32> to vector<128x1xf32>
    %cst_29 = arith.constant 1.280000e+02 : f32
    %62 = vector.broadcast %cst_29 : f32 to vector<128x1xf32>
    %63 = arith.divf %61, %62 : vector<128x1xf32>
    %64 = vector.broadcast %56 : vector<128x1xf32> to vector<128x128xf32>
    %65 = arith.subf %52, %64 : vector<128x128xf32>
    %cst_30 = arith.constant 9.99999974E-6 : f32
    %66 = vector.broadcast %cst_30 : f32 to vector<128x1xf32>
    %67 = arith.addf %63, %66 : vector<128x1xf32>
    %68 = math.rsqrt %67 : vector<128x1xf32>
    %69 = vector.broadcast %68 : vector<128x1xf32> to vector<128x128xf32>
    %70 = arith.mulf %65, %69 : vector<128x128xf32>
    %c0_31 = arith.constant 0 : index
    %c0_32 = arith.constant 0 : index
    %71 = vector.load %arg6[%c0_31, %c0_32] : memref<1x128xf32, #tpu.memory_space<vmem>>, vector<1x128xf32>
    %72 = vector.broadcast %71 : vector<1x128xf32> to vector<128x128xf32>
    %73 = arith.mulf %70, %72 : vector<128x128xf32>
    %c0_33 = arith.constant 0 : index
    %c0_34 = arith.constant 0 : index
    %74 = vector.load %arg7[%c0_33, %c0_34] : memref<1x128xf32, #tpu.memory_space<vmem>>, vector<1x128xf32>
    %75 = vector.broadcast %74 : vector<1x128xf32> to vector<128x128xf32>
    %76 = arith.addf %73, %75 : vector<128x128xf32>
    %c0_35 = arith.constant 0 : index
    %c0_36 = arith.constant 0 : index
    %77 = vector.load %arg8[%c0_35, %c0_36] : memref<128x128xf32, #tpu.memory_space<vmem>>, vector<128x128xf32>
    tpu.vector_store %arg8[%c0_35, %c0_36], %76 {strides = array<i32>} : memref<128x128xf32, #tpu.memory_space<vmem>>, vector<128x128xf32>,
    return
  }
  func.func @transform_0(%arg0: i32) -> (i32, i32) {
    %c0_i32 = arith.constant 0 : i32
    %c0_i32_0 = arith.constant 0 : i32
    return %arg0, %c0_i32 : i32, i32
  }
  func.func @transform_1(%arg0: i32) -> (i32, i32) {
    %c0_i32 = arith.constant 0 : i32
    %c0_i32_0 = arith.constant 0 : i32
    %c0_i32_1 = arith.constant 0 : i32
    return %c0_i32, %c0_i32_0 : i32, i32
  }
  func.func @transform_2(%arg0: i32) -> (i32, i32) {
    %c0_i32 = arith.constant 0 : i32
    %c0_i32_0 = arith.constant 0 : i32
    %c0_i32_1 = arith.constant 0 : i32
    return %c0_i32, %c0_i32_0 : i32, i32
  }
  func.func @transform_3(%arg0: i32) -> (i32, i32) {
    %c0_i32 = arith.constant 0 : i32
    %c0_i32_0 = arith.constant 0 : i32
    %c0_i32_1 = arith.constant 0 : i32
    return %c0_i32, %c0_i32_0 : i32, i32
  }
  func.func @transform_4(%arg0: i32) -> (i32, i32) {
    %c0_i32 = arith.constant 0 : i32
    %c0_i32_0 = arith.constant 0 : i32
    %c0_i32_1 = arith.constant 0 : i32
    return %c0_i32, %c0_i32_0 : i32, i32
  }
  func.func @transform_5(%arg0: i32) -> (i32, i32) {
    %c0_i32 = arith.constant 0 : i32
    %c0_i32_0 = arith.constant 0 : i32
    %c0_i32_1 = arith.constant 0 : i32
    return %c0_i32, %c0_i32_0 : i32, i32
  }
  func.func @transform_6(%arg0: i32) -> (i32, i32) {
    %c0_i32 = arith.constant 0 : i32
    %c0_i32_0 = arith.constant 0 : i32
    %c0_i32_1 = arith.constant 0 : i32
    return %c0_i32, %c0_i32_0 : i32, i32
  }
  func.func @transform_7(%arg0: i32) -> (i32, i32) {
    %c0_i32 = arith.constant 0 : i32
    %c0_i32_0 = arith.constant 0 : i32
    return %arg0, %c0_i32 : i32, i32
  }
}

module attributes {stable_mosaic.version = 11 : i64} {
  func.func @projection_head_kernel(%arg0: i32, %arg1: memref<128x64xf32, #tpu.memory_space<vmem>>, %arg2: memref<64x128xf32, #tpu.memory_space<vmem>>, %arg3: memref<1x128xf32, #tpu.memory_space<vmem>>, %arg4: memref<128x128xf32, #tpu.memory_space<vmem>>, %arg5: memref<1x128xf32, #tpu.memory_space<vmem>>, %arg6: memref<1x128xf32, #tpu.memory_space<vmem>>, %arg7: memref<1x128xf32, #tpu.memory_space<vmem>>, %arg8: memref<128x128xf32, #tpu.memory_space<vmem>>) attributes {dimension_semantics = [#tpu.dimension_semantics<parallel>], iteration_bounds = array<i64: 2>, scalar_prefetch = 0 : i64, scratch_operands = 0 : i64, tpu.core_type = #tpu.core_type<tc>, window_params = [{transform_indices = @transform_0, window_bounds = array<i64: 128, 64>}, {pipeline_mode = #tpu.pipeline_mode<synchronous>, transform_indices = @transform_1, window_bounds = array<i64: 64, 128>}, {pipeline_mode = #tpu.pipeline_mode<synchronous>, transform_indices = @transform_2, window_bounds = array<i64: 1, 128>}, {pipeline_mode = #tpu.pipeline_mode<synchronous>, transform_indices = @transform_3, window_bounds = array<i64: 128, 128>}, {pipeline_mode = #tpu.pipeline_mode<synchronous>, transform_indices = @transform_4, window_bounds = array<i64: 1, 128>}, {pipeline_mode = #tpu.pipeline_mode<synchronous>, transform_indices = @transform_5, window_bounds = array<i64: 1, 128>}, {pipeline_mode = #tpu.pipeline_mode<synchronous>, transform_indices = @transform_6, window_bounds = array<i64: 1, 128>}, {transform_indices = @transform_7, window_bounds = array<i64: 128, 128>}]} {
    %c0 = arith.constant 0 : index
    %c0_0 = arith.constant 0 : index
    %0 = vector.load %arg1[%c0, %c0_0] : memref<128x64xf32, #tpu.memory_space<vmem>>, vector<128x64xf32>
    %c0_1 = arith.constant 0 : index
    %c0_2 = arith.constant 0 : index
    %1 = vector.load %arg2[%c0_1, %c0_2] : memref<64x128xf32, #tpu.memory_space<vmem>>, vector<64x128xf32>
    %cst = arith.constant dense<0.000000e+00> : vector<128x128xf32>
    %2 = tpu.matmul %0, %1, %cst {dimension_numbers = #tpu.dot_dimension_numbers<[1], [0], [0], [1], [0, 0, 1, 1], [], []>} : vector<128x64xf32>, vector<64x128xf32>, vector<128x128xf32> -> vector<128x128xf32>
    %c0_3 = arith.constant 0 : index
    %c0_4 = arith.constant 0 : index
    %3 = vector.load %arg3[%c0_3, %c0_4] : memref<1x128xf32, #tpu.memory_space<vmem>>, vector<1x128xf32>
    %4 = vector.broadcast %3 : vector<1x128xf32> to vector<128x128xf32>
    %5 = arith.addf %2, %4 : vector<128x128xf32>
    %cst_5 = arith.constant 5.000000e-01 : f32
    %6 = vector.broadcast %cst_5 : f32 to vector<128x128xf32>
    %7 = arith.mulf %6, %5 : vector<128x128xf32>
    %cst_6 = arith.constant 0.707106769 : f32
    %8 = vector.broadcast %cst_6 : f32 to vector<128x128xf32>
    %9 = arith.mulf %5, %8 : vector<128x128xf32>
    %cst_7 = arith.constant 0.000000e+00 : f32
    %10 = vector.broadcast %cst_7 : f32 to vector<128x128xf32>
    %11 = arith.cmpf oge, %9, %10 : vector<128x128xf32>
    %cst_8 = arith.constant 1.000000e+00 : f32
    %cst_9 = arith.constant -1.000000e+00 : f32
    %12 = vector.broadcast %cst_8 : f32 to vector<128x128xf32>
    %13 = vector.broadcast %cst_9 : f32 to vector<128x128xf32>
    %14 = arith.select %11, %12, %13 : vector<128x128xi1>, vector<128x128xf32>
    %15 = math.absf %9 : vector<128x128xf32>
    %cst_10 = arith.constant 0.327591091 : f32
    %16 = vector.broadcast %cst_10 : f32 to vector<128x128xf32>
    %17 = arith.mulf %16, %15 : vector<128x128xf32>
    %cst_11 = arith.constant 1.000000e+00 : f32
    %18 = vector.broadcast %cst_11 : f32 to vector<128x128xf32>
    %19 = arith.addf %18, %17 : vector<128x128xf32>
    %cst_12 = arith.constant 1.000000e+00 : f32
    %20 = vector.broadcast %cst_12 : f32 to vector<128x128xf32>
    %21 = arith.divf %20, %19 : vector<128x128xf32>
    %cst_13 = arith.constant 1.06140542 : f32
    %22 = vector.broadcast %cst_13 : f32 to vector<128x128xf32>
    %23 = arith.mulf %22, %21 : vector<128x128xf32>
    %cst_14 = arith.constant -1.45315206 : f32
    %24 = vector.broadcast %cst_14 : f32 to vector<128x128xf32>
    %25 = arith.addf %23, %24 : vector<128x128xf32>
    %26 = arith.mulf %25, %21 : vector<128x128xf32>
    %cst_15 = arith.constant 1.42141378 : f32
    %27 = vector.broadcast %cst_15 : f32 to vector<128x128xf32>
    %28 = arith.addf %26, %27 : vector<128x128xf32>
    %29 = arith.mulf %28, %21 : vector<128x128xf32>
    %cst_16 = arith.constant -0.284496725 : f32
    %30 = vector.broadcast %cst_16 : f32 to vector<128x128xf32>
    %31 = arith.addf %29, %30 : vector<128x128xf32>
    %32 = arith.mulf %31, %21 : vector<128x128xf32>
    %cst_17 = arith.constant 0.254829586 : f32
    %33 = vector.broadcast %cst_17 : f32 to vector<128x128xf32>
    %34 = arith.addf %32, %33 : vector<128x128xf32>
    %35 = arith.mulf %34, %21 : vector<128x128xf32>
    %cst_18 = arith.constant 0.000000e+00 : f32
    %36 = vector.broadcast %cst_18 : f32 to vector<128x128xf32>
    %37 = arith.subf %36, %15 : vector<128x128xf32>
    %38 = arith.mulf %37, %15 : vector<128x128xf32>
    %39 = math.exp %38 : vector<128x128xf32>
    %40 = arith.mulf %35, %39 : vector<128x128xf32>
    %cst_19 = arith.constant 1.000000e+00 : f32
    %41 = vector.broadcast %cst_19 : f32 to vector<128x128xf32>
    %42 = arith.subf %41, %40 : vector<128x128xf32>
    %43 = arith.mulf %14, %42 : vector<128x128xf32>
    %cst_20 = arith.constant 1.000000e+00 : f32
    %44 = vector.broadcast %cst_20 : f32 to vector<128x128xf32>
    %45 = arith.addf %44, %43 : vector<128x128xf32>
    %46 = arith.mulf %7, %45 : vector<128x128xf32>
    %c0_21 = arith.constant 0 : index
    %c0_22 = arith.constant 0 : index
    %47 = vector.load %arg4[%c0_21, %c0_22] : memref<128x128xf32, #tpu.memory_space<vmem>>, vector<128x128xf32>
    %cst_23 = arith.constant dense<0.000000e+00> : vector<128x128xf32>
    %48 = tpu.matmul %46, %47, %cst_23 {dimension_numbers = #tpu.dot_dimension_numbers<[1], [0], [0], [1], [0, 0, 1, 1], [], []>} : vector<128x128xf32>, vector<128x128xf32>, vector<128x128xf32> -> vector<128x128xf32>
    %c0_24 = arith.constant 0 : index
    %c0_25 = arith.constant 0 : index
    %49 = vector.load %arg5[%c0_24, %c0_25] : memref<1x128xf32, #tpu.memory_space<vmem>>, vector<1x128xf32>
    %50 = vector.broadcast %49 : vector<1x128xf32> to vector<128x128xf32>
    %51 = arith.addf %48, %50 : vector<128x128xf32>
    %52 = arith.addf %51, %5 : vector<128x128xf32>
    %cst_26 = arith.constant dense<0.000000e+00> : vector<128xf32>
    %53 = vector.multi_reduction <add>, %52, %cst_26 [1] : vector<128x128xf32> to vector<128xf32>
    %54 = vector.shape_cast %53 : vector<128xf32> to vector<128x1xf32>
    %cst_27 = arith.constant 1.280000e+02 : f32
    %55 = vector.broadcast %cst_27 : f32 to vector<128x1xf32>
    %56 = arith.divf %54, %55 : vector<128x1xf32>
    %57 = vector.broadcast %56 : vector<128x1xf32> to vector<128x128xf32>
    %58 = arith.subf %52, %57 : vector<128x128xf32>
    %59 = arith.mulf %58, %58 : vector<128x128xf32>
    %cst_28 = arith.constant dense<0.000000e+00> : vector<128xf32>
    %60 = vector.multi_reduction <add>, %59, %cst_28 [1] : vector<128x128xf32> to vector<128xf32>
    %61 = vector.shape_cast %60 : vector<128xf32> to vector<128x1xf32>
    %cst_29 = arith.constant 1.280000e+02 : f32
    %62 = vector.broadcast %cst_29 : f32 to vector<128x1xf32>
    %63 = arith.divf %61, %62 : vector<128x1xf32>
    %64 = vector.broadcast %56 : vector<128x1xf32> to vector<128x128xf32>
    %65 = arith.subf %52, %64 : vector<128x128xf32>
    %cst_30 = arith.constant 9.99999974E-6 : f32
    %66 = vector.broadcast %cst_30 : f32 to vector<128x1xf32>
    %67 = arith.addf %63, %66 : vector<128x1xf32>
    %68 = math.rsqrt %67 : vector<128x1xf32>
    %69 = vector.broadcast %68 : vector<128x1xf32> to vector<128x128xf32>
    %70 = arith.mulf %65, %69 : vector<128x128xf32>
    %c0_31 = arith.constant 0 : index
    %c0_32 = arith.constant 0 : index
    %71 = vector.load %arg6[%c0_31, %c0_32] : memref<1x128xf32, #tpu.memory_space<vmem>>, vector<1x128xf32>
    %72 = vector.broadcast %71 : vector<1x128xf32> to vector<128x128xf32>
    %73 = arith.mulf %70, %72 : vector<128x128xf32>
    %c0_33 = arith.constant 0 : index
    %c0_34 = arith.constant 0 : index
    %74 = vector.load %arg7[%c0_33, %c0_34] : memref<1x128xf32, #tpu.memory_space<vmem>>, vector<1x128xf32>
    %75 = vector.broadcast %74 : vector<1x128xf32> to vector<128x128xf32>
    %76 = arith.addf %73, %75 : vector<128x128xf32>
    %c0_35 = arith.constant 0 : index
    %c0_36 = arith.constant 0 : index
    %77 = vector.load %arg8[%c0_35, %c0_36] : memref<128x128xf32, #tpu.memory_space<vmem>>, vector<128x128xf32>
    tpu.vector_store %arg8[%c0_35, %c0_36], %76 {strides = array<i32>} : memref<128x128xf32, #tpu.memory_space<vmem>>, vector<128x128xf32>,
    return
  }
  func.func @transform_0(%arg0: i32) -> (i32, i32) {
    %c0_i32 = arith.constant 0 : i32
    %c0_i32_0 = arith.constant 0 : i32
    return %arg0, %c0_i32 : i32, i32
  }
  func.func @transform_1(%arg0: i32) -> (i32, i32) {
    %c0_i32 = arith.constant 0 : i32
    %c0_i32_0 = arith.constant 0 : i32
    %c0_i32_1 = arith.constant 0 : i32
    return %c0_i32, %c0_i32_0 : i32, i32
  }
  func.func @transform_2(%arg0: i32) -> (i32, i32) {
    %c0_i32 = arith.constant 0 : i32
    %c0_i32_0 = arith.constant 0 : i32
    %c0_i32_1 = arith.constant 0 : i32
    return %c0_i32, %c0_i32_0 : i32, i32
  }
  func.func @transform_3(%arg0: i32) -> (i32, i32) {
    %c0_i32 = arith.constant 0 : i32
    %c0_i32_0 = arith.constant 0 : i32
    %c0_i32_1 = arith.constant 0 : i32
    return %c0_i32, %c0_i32_0 : i32, i32
  }
  func.func @transform_4(%arg0: i32) -> (i32, i32) {
    %c0_i32 = arith.constant 0 : i32
    %c0_i32_0 = arith.constant 0 : i32
    %c0_i32_1 = arith.constant 0 : i32
    return %c0_i32, %c0_i32_0 : i32, i32
  }
  func.func @transform_5(%arg0: i32) -> (i32, i32) {
    %c0_i32 = arith.constant 0 : i32
    %c0_i32_0 = arith.constant 0 : i32
    %c0_i32_1 = arith.constant 0 : i32
    return %c0_i32, %c0_i32_0 : i32, i32
  }
  func.func @transform_6(%arg0: i32) -> (i32, i32) {
    %c0_i32 = arith.constant 0 : i32
    %c0_i32_0 = arith.constant 0 : i32
    %c0_i32_1 = arith.constant 0 : i32
    return %c0_i32, %c0_i32_0 : i32, i32
  }
  func.func @transform_7(%arg0: i32) -> (i32, i32) {
    %c0_i32 = arith.constant 0 : i32
    %c0_i32_0 = arith.constant 0 : i32
    return %arg0, %c0_i32 : i32, i32
  }
}

</mosaic_0001>

<llo_original>
// kernel: tpu_custom_call.1
$region0: #{tpu_custom_call.1}
  #allocation0 [shape = 'u32[]', space=smem, size = 0x4, offset = 0x4, fixed_abs, tag = 'smem constant byte address 0x4 - core index']
  #allocation1 [shape = 'u32[144,128]{1,0:T(1,128)}', space=vmem, size = 0x12000, scoped, tag = 'internal scratch']
  %s0 = inlined_call_operand.vmem [shape: f32[256,64], index: 0, kind: input, shape index: {}]
  %s1 = inlined_call_operand.vmem [shape: f32[64,128], index: 1, kind: input, shape index: {}]
  %s2 = inlined_call_operand.vmem [shape: f32[1,128], index: 2, kind: input, shape index: {}]
  %s3 = inlined_call_operand.vmem [shape: f32[128,128], index: 3, kind: input, shape index: {}]
  %s4 = inlined_call_operand.vmem [shape: f32[1,128], index: 4, kind: input, shape index: {}]
  %s5 = inlined_call_operand.vmem [shape: f32[1,128], index: 5, kind: input, shape index: {}]
  %s6 = inlined_call_operand.vmem [shape: f32[1,128], index: 6, kind: input, shape index: {}]
  %s7 = inlined_call_operand.hbm [shape: f32[256,128], index: 7, kind: output, shape index: {}]
  %s8 = sld [smem:[#allocation0]]
  $region61: #{tpu_custom_call.1} parent=0
    _
  %s10 = ssub.s32 1, %s8
  %s11 = scalar_select 0, %s10, %s8
  $region1: #{tpu_custom_call.1} parent=0
    #allocation2 [shape = 'u8[131072]{0}', space=vmem, size = 0x20000, scoped, tag = 'output window, operand 0']
    #allocation3 [shape = 's32[2]{0}', space=sflag, size = 0x8, scoped, tag = 'scoped memory for tpu_custom_call.1']
    %12 = vsyncpa [#allocation3], 0
    %s13 = scalar_lea.sflag [#allocation3], 1
    %14 = vsyncpa %s13, 0
    loop: start=0, step=1, limit=4
    $region2: #{tpu_custom_call.1} parent=1 // loop_pre_header
      _
    $region3: #{tpu_custom_call.1} parent=1 // loop_header
      %s16 = sphi 0, %s20
      %p17 = scmp.ge.s32.totalorder %s16, 4
      %s26 = sphi 0, %s28
      %s29 = sphi 0, %s26
      %s30 = sphi 0, %s29
      %s46 = sphi 0, %s30
      %s50 = sphi 0, %s50
      %s52 = sphi 0, %s50
      %s53 = sphi 0, %s52
      %s67 = sphi 0, %s53
      %s71 = sphi 0, %s71
      %s73 = sphi 0, %s71
      %s74 = sphi 0, %s73
      %s88 = sphi 0, %s74
      %s92 = sphi 0, %s92
      %s94 = sphi 0, %s92
      %s95 = sphi 0, %s94
      %s109 = sphi 0, %s95
      %s113 = sphi 0, %s113
      %s115 = sphi 0, %s113
      %s116 = sphi 0, %s115
      %s130 = sphi 0, %s116
      %s134 = sphi 0, %s134
      %s136 = sphi 0, %s134
      %s137 = sphi 0, %s136
      %s151 = sphi 0, %s137
      %s155 = sphi 0, %s155
      %s157 = sphi 0, %s155
      %s158 = sphi 0, %s157
      %s172 = sphi 0, %s158
      %s178 = sphi 0, %s180
      %s181 = sphi 0, %s178
      %s182 = sphi 0, %s181
      %s198 = sphi 0, %s182
    $region4: #{tpu_custom_call.1} parent=1 // loop_header_branch
      %19 = sbr.rel (%p17) target = $region8
    $region5: #{tpu_custom_call.1} parent=1 // loop_body
      %s21 = ssub.s32 %s16, 1
      %s22 = ssub.s32 %s16, 2
      %s23 = sadd.s32 %s16, 1
      %s24 = ssub.s32 %s16, %s23
      %p25 = scmp.eq.s32.totalorder %s24, 0
      %s27 = sadd.s32 %s26, 1
      %s28 = scalar_select %p25, %s26, %s27
      %p31 = pneg %p25
      %p32 = scmp.eq.s32.totalorder %s16, 1
      %p33 = por %p31, %p32
      %p34 = scmp.ne.s32.totalorder %s26, %s29
      %p35 = scmp.eq.s32.totalorder %s16, 0
      %p36 = por %p34, %p35
      %p37 = scmp.ne.s32.totalorder %s26, %s29
      %p38 = scmp.eq.s32.totalorder %s21, 1
      %p39 = por %p37, %p38
      %p40 = scmp.ne.s32.totalorder %s29, %s30
      %p41 = scmp.eq.s32.totalorder %s21, 0
      %p42 = por %p40, %p41
      %p43 = scmp.ne.s32.totalorder %s29, %s30
      %p44 = scmp.eq.s32.totalorder %s22, 1
      %p45 = por %p43, %p44
      %p47 = scmp.ne.s32.totalorder %s30, %s46
      %p48 = scmp.eq.s32.totalorder %s22, 0
      %p49 = por %p47, %p48
      %s51 = sadd.s32 %s50, 1
      %p54 = scmp.eq.s32.totalorder %s16, 1
      %p55 = scmp.ne.s32.totalorder %s50, %s52
      %p56 = scmp.eq.s32.totalorder %s16, 0
      %p57 = por %p55, %p56
      %p58 = scmp.ne.s32.totalorder %s50, %s52
      %p59 = scmp.eq.s32.totalorder %s21, 1
      %p60 = por %p58, %p59
      %p61 = scmp.ne.s32.totalorder %s52, %s53
      %p62 = scmp.eq.s32.totalorder %s21, 0
      %p63 = por %p61, %p62
      %p64 = scmp.ne.s32.totalorder %s52, %s53
      %p65 = scmp.eq.s32.totalorder %s22, 1
      %p66 = por %p64, %p65
      %p68 = scmp.ne.s32.totalorder %s53, %s67
      %p69 = scmp.eq.s32.totalorder %s22, 0
      %p70 = por %p68, %p69
      %s72 = sadd.s32 %s71, 1
      %p75 = scmp.eq.s32.totalorder %s16, 1
      %p76 = scmp.ne.s32.totalorder %s71, %s73
      %p77 = scmp.eq.s32.totalorder %s16, 0
      %p78 = por %p76, %p77
      %p79 = scmp.ne.s32.totalorder %s71, %s73
      %p80 = scmp.eq.s32.totalorder %s21, 1
      %p81 = por %p79, %p80
      %p82 = scmp.ne.s32.totalorder %s73, %s74
      %p83 = scmp.eq.s32.totalorder %s21, 0
      %p84 = por %p82, %p83
      %p85 = scmp.ne.s32.totalorder %s73, %s74
      %p86 = scmp.eq.s32.totalorder %s22, 1
      %p87 = por %p85, %p86
      %p89 = scmp.ne.s32.totalorder %s74, %s88
      %p90 = scmp.eq.s32.totalorder %s22, 0
      %p91 = por %p89, %p90
      %s93 = sadd.s32 %s92, 1
      %p96 = scmp.eq.s32.totalorder %s16, 1
      %p97 = scmp.ne.s32.totalorder %s92, %s94
      %p98 = scmp.eq.s32.totalorder %s16, 0
      %p99 = por %p97, %p98
      %p100 = scmp.ne.s32.totalorder %s92, %s94
      %p101 = scmp.eq.s32.totalorder %s21, 1
      %p102 = por %p100, %p101
      %p103 = scmp.ne.s32.totalorder %s94, %s95
      %p104 = scmp.eq.s32.totalorder %s21, 0
      %p105 = por %p103, %p104
      %p106 = scmp.ne.s32.totalorder %s94, %s95
      %p107 = scmp.eq.s32.totalorder %s22, 1
      %p108 = por %p106, %p107
      %p110 = scmp.ne.s32.totalorder %s95, %s109
      %p111 = scmp.eq.s32.totalorder %s22, 0
      %p112 = por %p110, %p111
      %s114 = sadd.s32 %s113, 1
      %p117 = scmp.eq.s32.totalorder %s16, 1
      %p118 = scmp.ne.s32.totalorder %s113, %s115
      %p119 = scmp.eq.s32.totalorder %s16, 0
      %p120 = por %p118, %p119
      %p121 = scmp.ne.s32.totalorder %s113, %s115
      %p122 = scmp.eq.s32.totalorder %s21, 1
      %p123 = por %p121, %p122
      %p124 = scmp.ne.s32.totalorder %s115, %s116
      %p125 = scmp.eq.s32.totalorder %s21, 0
      %p126 = por %p124, %p125
      %p127 = scmp.ne.s32.totalorder %s115, %s116
      %p128 = scmp.eq.s32.totalorder %s22, 1
      %p129 = por %p127, %p128
      %p131 = scmp.ne.s32.totalorder %s116, %s130
      %p132 = scmp.eq.s32.totalorder %s22, 0
      %p133 = por %p131, %p132
      %s135 = sadd.s32 %s134, 1
      %p138 = scmp.eq.s32.totalorder %s16, 1
      %p139 = scmp.ne.s32.totalorder %s134, %s136
      %p140 = scmp.eq.s32.totalorder %s16, 0
      %p141 = por %p139, %p140
      %p142 = scmp.ne.s32.totalorder %s134, %s136
      %p143 = scmp.eq.s32.totalorder %s21, 1
      %p144 = por %p142, %p143
      %p145 = scmp.ne.s32.totalorder %s136, %s137
      %p146 = scmp.eq.s32.totalorder %s21, 0
      %p147 = por %p145, %p146
      %p148 = scmp.ne.s32.totalorder %s136, %s137
      %p149 = scmp.eq.s32.totalorder %s22, 1
      %p150 = por %p148, %p149
      %p152 = scmp.ne.s32.totalorder %s137, %s151
      %p153 = scmp.eq.s32.totalorder %s22, 0
      %p154 = por %p152, %p153
      %s156 = sadd.s32 %s155, 1
      %p159 = scmp.eq.s32.totalorder %s16, 1
      %p160 = scmp.ne.s32.totalorder %s155, %s157
      %p161 = scmp.eq.s32.totalorder %s16, 0
      %p162 = por %p160, %p161
      %p163 = scmp.ne.s32.totalorder %s155, %s157
      %p164 = scmp.eq.s32.totalorder %s21, 1
      %p165 = por %p163, %p164
      %p166 = scmp.ne.s32.totalorder %s157, %s158
      %p167 = scmp.eq.s32.totalorder %s21, 0
      %p168 = por %p166, %p167
      %p169 = scmp.ne.s32.totalorder %s157, %s158
      %p170 = scmp.eq.s32.totalorder %s22, 1
      %p171 = por %p169, %p170
      %p173 = scmp.ne.s32.totalorder %s158, %s172
      %p174 = scmp.eq.s32.totalorder %s22, 0
      %p175 = por %p173, %p174
      %s176 = ssub.s32 %s16, %s23
      %p177 = scmp.eq.s32.totalorder %s176, 0
      %s179 = sadd.s32 %s178, 1
      %s180 = scalar_select %p177, %s178, %s179
      %p183 = pneg %p177
      %p184 = scmp.eq.s32.totalorder %s16, 1
      %p185 = por %p183, %p184
      %p186 = scmp.ne.s32.totalorder %s178, %s181
      %p187 = scmp.eq.s32.totalorder %s16, 0
      %p188 = por %p186, %p187
      %p189 = scmp.ne.s32.totalorder %s178, %s181
      %p190 = scmp.eq.s32.totalorder %s21, 1
      %p191 = por %p189, %p190
      %p192 = scmp.ne.s32.totalorder %s181, %s182
      %p193 = scmp.eq.s32.totalorder %s21, 0
      %p194 = por %p192, %p193
      %p195 = scmp.ne.s32.totalorder %s181, %s182
      %p196 = scmp.eq.s32.totalorder %s22, 1
      %p197 = por %p195, %p196
      %p199 = scmp.ne.s32.totalorder %s182, %s198
      %p200 = scmp.eq.s32.totalorder %s22, 0
      %p201 = por %p199, %p200
      %p202 = scmp.le.s32.totalorder 1, %s16
      %p203 = scmp.lt.s32.totalorder %s16, 3
      %p204 = pnand %p202, %p203
      %p205 = pneg %p204
      // Predicated region
      $region9: #{tpu_custom_call.1} parent=5 // pred_check
        _
      $region10: #{tpu_custom_call.1} parent=5 // pred_check_branch
        %207 = sbr.rel (%p204) target = $region12
      $region11: #{tpu_custom_call.1} parent=5 // pred_region
        %s208 = ssub.s32 %s16, 1
        // Predicated region
        $region13: #{tpu_custom_call.1} parent=11 // pred_check
          %p209 = pneg %p63
        $region14: #{tpu_custom_call.1} parent=11 // pred_check_branch
          %211 = sbr.rel (%p209) target = $region16
        $region15: #{tpu_custom_call.1} parent=11 // pred_region
          _
        $region16: #{tpu_custom_call.1} parent=11 // pred_fallthru
          _
        // Predicated region
        $region17: #{tpu_custom_call.1} parent=11 // pred_check
          %p212 = pneg %p84
        $region18: #{tpu_custom_call.1} parent=11 // pred_check_branch
          %214 = sbr.rel (%p212) target = $region20
        $region19: #{tpu_custom_call.1} parent=11 // pred_region
          _
        $region20: #{tpu_custom_call.1} parent=11 // pred_fallthru
          _
        // Predicated region
        $region21: #{tpu_custom_call.1} parent=11 // pred_check
          %p215 = pneg %p105
        $region22: #{tpu_custom_call.1} parent=11 // pred_check_branch
          %217 = sbr.rel (%p215) target = $region24
        $region23: #{tpu_custom_call.1} parent=11 // pred_region
          _
        $region24: #{tpu_custom_call.1} parent=11 // pred_fallthru
          _
        // Predicated region
        $region25: #{tpu_custom_call.1} parent=11 // pred_check
          %p218 = pneg %p126
        $region26: #{tpu_custom_call.1} parent=11 // pred_check_branch
          %220 = sbr.rel (%p218) target = $region28
        $region27: #{tpu_custom_call.1} parent=11 // pred_region
          _
        $region28: #{tpu_custom_call.1} parent=11 // pred_fallthru
          _
        // Predicated region
        $region29: #{tpu_custom_call.1} parent=11 // pred_check
          %p221 = pneg %p147
        $region30: #{tpu_custom_call.1} parent=11 // pred_check_branch
          %223 = sbr.rel (%p221) target = $region32
        $region31: #{tpu_custom_call.1} parent=11 // pred_region
          _
        $region32: #{tpu_custom_call.1} parent=11 // pred_fallthru
          _
        // Predicated region
        $region33: #{tpu_custom_call.1} parent=11 // pred_check
          %p224 = pneg %p168
        $region34: #{tpu_custom_call.1} parent=11 // pred_check_branch
          %226 = sbr.rel (%p224) target = $region36
        $region35: #{tpu_custom_call.1} parent=11 // pred_region
          _
        $region36: #{tpu_custom_call.1} parent=11 // pred_fallthru
          _
      $region12: #{tpu_custom_call.1} parent=5 // pred_fallthru
        _
      %p227 = scmp.lt.s32.totalorder %s16, 2
      // Predicated region
      $region37: #{tpu_custom_call.1} parent=5 // pred_check
        %p228 = pneg %p227
      $region38: #{tpu_custom_call.1} parent=5 // pred_check_branch
        %230 = sbr.rel (%p228) target = $region40
      $region39: #{tpu_custom_call.1} parent=5 // pred_region
        // Predicated region
        $region41: #{tpu_custom_call.1} parent=39 // pred_check
          %p231 = pneg %p36
        $region42: #{tpu_custom_call.1} parent=39 // pred_check_branch
          %233 = sbr.rel (%p231) target = $region44
        $region43: #{tpu_custom_call.1} parent=39 // pred_region
          %s234 = smul.u32 16, %s16
          %p235 = scmp.lt.s32.totalorder %s234, 31
          %s236 = scalar_select %p235, %s234, 31
          %s237 = smul.addr %s236, 8
          %s238 = scalar_lea.vmem %s0, %s237
          %s239 = smul.u32 16, %s16
        $region44: #{tpu_custom_call.1} parent=39 // pred_fallthru
          _
      $region40: #{tpu_custom_call.1} parent=5 // pred_fallthru
        _
      %p240 = scmp.le.s32.totalorder 1, %s16
      %p241 = scmp.lt.s32.totalorder %s16, 3
      %p242 = pnand %p240, %p241
      %p243 = pneg %p242
      // Predicated region
      $region45: #{tpu_custom_call.1} parent=5 // pred_check
        _
      $region46: #{tpu_custom_call.1} parent=5 // pred_check_branch
        %245 = sbr.rel (%p242) target = $region48
      $region47: #{tpu_custom_call.1} parent=5 // pred_region
        %s246 = ssub.s32 %s16, 1
        %s247 = smul.u32 16, %s21
        %p248 = scmp.lt.s32.totalorder %s247, 31
        %s249 = scalar_select %p248, %s247, 31
        %s250 = smul.addr %s249, 8
        %s251 = scalar_lea.vmem %s0, %s250
        %p252 = pneg %p42
        %p253 = pneg %p39
        %p254 = pneg %p63
        %p255 = pneg %p60
        %p256 = pneg %p84
        %p257 = pneg %p81
        %p258 = pneg %p105
        %p259 = pneg %p102
        %p260 = pneg %p126
        %p261 = pneg %p123
        %p262 = pneg %p147
        %p263 = pneg %p144
        %p264 = pneg %p168
        %p265 = pneg %p165
        %p266 = pneg %p194
        %p267 = pneg %p191
        %s268 = sand.u32 %s181, 1
        %s269 = scalar_lea.sflag [#allocation3], %s268
        %s270 = sand.u32 %s181, 1
        %s271 = smul.addr %s270, 128
        %s272 = scalar_lea.vmem [#allocation2], %s271
        %s273 = smul.u32 16, %s21
        %p274 = scmp.lt.s32.totalorder %s273, 31
        %s275 = scalar_select %p274, %s273, 31
        %s276 = smul.addr %s275, 8
        %s277 = scalar_lea.vmem %s0, %s276
        %s278 = smul.u32 16, %s21
        %s279 = smul.u32 16, %s21
        %v280 = vld [vmem:[%s277] sm:$0xff]
        %v281 = vld [vmem:[%s277 + $0x8] sm:$0xff]
        %v282 = vld [vmem:[%s277 + $0x10] sm:$0xff]
        %v283 = vld [vmem:[%s277 + $0x18] sm:$0xff]
        %v284 = vld [vmem:[%s277 + $0x20] sm:$0xff]
        %v285 = vld [vmem:[%s277 + $0x28] sm:$0xff]
        %v286 = vld [vmem:[%s277 + $0x30] sm:$0xff]
        %v287 = vld [vmem:[%s277 + $0x38] sm:$0xff]
        %v288 = vld [vmem:[%s277 + $0x40] sm:$0xff]
        %v289 = vld [vmem:[%s277 + $0x48] sm:$0xff]
        %v290 = vld [vmem:[%s277 + $0x50] sm:$0xff]
        %v291 = vld [vmem:[%s277 + $0x58] sm:$0xff]
        %v292 = vld [vmem:[%s277 + $0x60] sm:$0xff]
        %v293 = vld [vmem:[%s277 + $0x68] sm:$0xff]
        %v294 = vld [vmem:[%s277 + $0x70] sm:$0xff]
        %v295 = vld [vmem:[%s277 + $0x78] sm:$0xff]
        %v296 = vld [vmem:[%s1] sm:$0xff]
        %v297 = vld [vmem:[%s1 + $0x8] sm:$0xff]
        %v298 = vld [vmem:[%s1 + $0x10] sm:$0xff]
        %v299 = vld [vmem:[%s1 + $0x18] sm:$0xff]
        %v300 = vld [vmem:[%s1 + $0x20] sm:$0xff]
        %v301 = vld [vmem:[%s1 + $0x28] sm:$0xff]
        %v302 = vld [vmem:[%s1 + $0x30] sm:$0xff]
        %v303 = vld [vmem:[%s1 + $0x38] sm:$0xff]
        %v304 = vld [vmem:[%s2] sm:$0x1]
        %v306 = vlaneseq
        %v307 = vshrl.u32 %v306, 7
        %v308 = vsub.s32 0, %v307
        %v309 = vrot.slane %v304, %v308
        %vm311 = vcmask 523264
        %v313 = vsel %vm311, %v280, 0
        %v316 = vsel %vm311, %v281, 0
        %v319 = vsel %vm311, %v282, 0
        %v322 = vsel %vm311, %v283, 0
        %v325 = vsel %vm311, %v284, 0
        %v328 = vsel %vm311, %v285, 0
        %v331 = vsel %vm311, %v286, 0
        %v334 = vsel %vm311, %v287, 0
        %v337 = vsel %vm311, %v288, 0
        %v340 = vsel %vm311, %v289, 0
        %v343 = vsel %vm311, %v290, 0
        %v346 = vsel %vm311, %v291, 0
        %v349 = vsel %vm311, %v292, 0
        %v352 = vsel %vm311, %v293, 0
        %v355 = vsel %vm311, %v294, 0
        %v358 = vsel %vm311, %v295, 0
        %360 = vmatprep.subr.mxu0 0.0
        %361 = vmatpush1.msra.mxu0 %v296
        %362 = vmatprep.subr.mxu0 0.0
        %363 = vmatpush1.msra.mxu0 %v297
        %364 = vmatprep.subr.mxu0 0.0
        %365 = vmatpush1.msra.mxu0 %v298
        %366 = vmatprep.subr.mxu0 0.0
        %367 = vmatpush1.msra.mxu0 %v299
        %368 = vmatprep.subr.mxu0 0.0
        %369 = vmatpush1.msra.mxu0 %v300
        %370 = vmatprep.subr.mxu0 0.0
        %371 = vmatpush1.msra.mxu0 %v301
        %372 = vmatprep.subr.mxu0 0.0
        %373 = vmatpush1.msra.mxu0 %v302
        %374 = vmatprep.subr.mxu0 0.0
        %375 = vmatpush1.msra.mxu0 %v303
        %376 = vmatprep.subr.mxu0 0.0
        %377 = vmatpush1.msra.mxu0 0.0
        %378 = vmatprep.subr.mxu0 0.0
        %379 = vmatpush1.msra.mxu0 0.0
        %380 = vmatprep.subr.mxu0 0.0
        %381 = vmatpush1.msra.mxu0 0.0
        %382 = vmatprep.subr.mxu0 0.0
        %383 = vmatpush1.msra.mxu0 0.0
        %384 = vmatprep.subr.mxu0 0.0
        %385 = vmatpush1.msra.mxu0 0.0
        %386 = vmatprep.subr.mxu0 0.0
        %387 = vmatpush1.msra.mxu0 0.0
        %388 = vmatprep.subr.mxu0 0.0
        %389 = vmatpush1.msra.mxu0 0.0
        %390 = vmatprep.subr.mxu0 0.0
        %391 = vmatpush1.msra.mxu0 0.0
        %392 = vmatprep.subr.mxu0 0.0
        %393 = vmatpush1.msra.mxu0 0.0
        %394 = vmatprep.subr.mxu0 0.0
        %395 = vmatpush1.msra.mxu0 0.0
        %396 = vmatprep.subr.mxu0 0.0
        %397 = vmatpush1.msra.mxu0 0.0
        %398 = vmatprep.subr.mxu0 0.0
        %399 = vmatpush1.msra.mxu0 0.0
        %400 = vmatprep.subr.mxu0 0.0
        %401 = vmatpush1.msra.mxu0 0.0
        %402 = vmatprep.subr.mxu0 0.0
        %403 = vmatpush1.msra.mxu0 0.0
        %404 = vmatprep.subr.mxu0 0.0
        %405 = vmatpush1.msra.mxu0 0.0
        %406 = vmatprep.subr.mxu0 0.0
        %407 = vmatpush1.msra.mxu0 0.0
        %408 = vmatprep.subr.mxu0 0.0
        %409 = vmatpush1.msra.mxu0 0.0
        %410 = vmatprep.subr.mxu0 0.0
        %411 = vmatpush1.msra.mxu0 0.0
        %412 = vmatprep.subr.mxu0 0.0
        %413 = vmatpush1.msra.mxu0 0.0
        %414 = vmatprep.subr.mxu0 0.0
        %415 = vmatpush1.msra.mxu0 0.0
        %416 = vmatprep.subr.mxu0 0.0
        %417 = vmatpush1.msra.mxu0 0.0
        %418 = vmatprep.subr.mxu0 0.0
        %419 = vmatpush1.msra.mxu0 0.0
        %420 = vmatprep.subr.mxu0 0.0
        %421 = vmatpush1.msra.mxu0 0.0
        %422 = vmatprep.subr.mxu0 0.0
        %423 = vmatpush1.msra.mxu0 0.0
        %424 = vmatprep.mubr.f32.mxu0 0.0
        %425 = vmatmul.mubr.f32.gmra.mrb[0].mxu0 %v313
        %v426 = vpop.f32.mrb[0].mxu0
        %v427 = vadd.f32 %v309, %v426
        %v428 = vpop.f32.mrb[0].mxu0
        %429 = vmatprep.mubr.f32.mxu0 0.0
        %430 = vmatmul.mubr.f32.gmra.mrb[0].mxu0 %v316
        %v431 = vpop.f32.mrb[0].mxu0
        %v432 = vadd.f32 %v309, %v431
        %v433 = vpop.f32.mrb[0].mxu0
        %434 = vmatprep.mubr.f32.mxu0 0.0
        %435 = vmatmul.mubr.f32.gmra.mrb[0].mxu0 %v319
        %v436 = vpop.f32.mrb[0].mxu0
        %v437 = vadd.f32 %v309, %v436
        %v438 = vpop.f32.mrb[0].mxu0
        %439 = vmatprep.mubr.f32.mxu0 0.0
        %440 = vmatmul.mubr.f32.gmra.mrb[0].mxu0 %v322
        %v441 = vpop.f32.mrb[0].mxu0
        %v442 = vadd.f32 %v309, %v441
        %v443 = vpop.f32.mrb[0].mxu0
        %444 = vmatprep.mubr.f32.mxu0 0.0
        %445 = vmatmul.mubr.f32.gmra.mrb[0].mxu0 %v325
        %v446 = vpop.f32.mrb[0].mxu0
        %v447 = vadd.f32 %v309, %v446
        %v448 = vpop.f32.mrb[0].mxu0
        %449 = vmatprep.mubr.f32.mxu0 0.0
        %450 = vmatmul.mubr.f32.gmra.mrb[0].mxu0 %v328
        %v451 = vpop.f32.mrb[0].mxu0
        %v452 = vadd.f32 %v309, %v451
        %v453 = vpop.f32.mrb[0].mxu0
        %454 = vmatprep.mubr.f32.mxu0 0.0
        %455 = vmatmul.mubr.f32.gmra.mrb[0].mxu0 %v331
        %v456 = vpop.f32.mrb[0].mxu0
        %v457 = vadd.f32 %v309, %v456
        %v458 = vpop.f32.mrb[0].mxu0
        %459 = vmatprep.mubr.f32.mxu0 0.0
        %460 = vmatmul.mubr.f32.gmra.mrb[0].mxu0 %v334
        %v461 = vpop.f32.mrb[0].mxu0
        %v462 = vadd.f32 %v309, %v461
        %v463 = vpop.f32.mrb[0].mxu0
        %464 = vmatprep.mubr.f32.mxu0 0.0
        %465 = vmatmul.mubr.f32.gmra.mrb[0].mxu0 %v337
        %v466 = vpop.f32.mrb[0].mxu0
        %v467 = vadd.f32 %v309, %v466
        %v468 = vpop.f32.mrb[0].mxu0
        %469 = vmatprep.mubr.f32.mxu0 0.0
        %470 = vmatmul.mubr.f32.gmra.mrb[0].mxu0 %v340
        %v471 = vpop.f32.mrb[0].mxu0
        %v472 = vadd.f32 %v309, %v471
        %v473 = vpop.f32.mrb[0].mxu0
        %474 = vmatprep.mubr.f32.mxu0 0.0
        %475 = vmatmul.mubr.f32.gmra.mrb[0].mxu0 %v343
        %v476 = vpop.f32.mrb[0].mxu0
        %v477 = vadd.f32 %v309, %v476
        %v478 = vpop.f32.mrb[0].mxu0
        %479 = vmatprep.mubr.f32.mxu0 0.0
        %480 = vmatmul.mubr.f32.gmra.mrb[0].mxu0 %v346
        %v481 = vpop.f32.mrb[0].mxu0
        %v482 = vadd.f32 %v309, %v481
        %v483 = vpop.f32.mrb[0].mxu0
        %484 = vmatprep.mubr.f32.mxu0 0.0
        %485 = vmatmul.mubr.f32.gmra.mrb[0].mxu0 %v349
        %v486 = vpop.f32.mrb[0].mxu0
        %v487 = vadd.f32 %v309, %v486
        %v488 = vpop.f32.mrb[0].mxu0
        %489 = vmatprep.mubr.f32.mxu0 0.0
        %490 = vmatmul.mubr.f32.gmra.mrb[0].mxu0 %v352
        %v491 = vpop.f32.mrb[0].mxu0
        %v492 = vadd.f32 %v309, %v491
        %v493 = vpop.f32.mrb[0].mxu0
        %494 = vmatprep.mubr.f32.mxu0 0.0
        %495 = vmatmul.mubr.f32.gmra.mrb[0].mxu0 %v355
        %v496 = vpop.f32.mrb[0].mxu0
        %v497 = vadd.f32 %v309, %v496
        %v498 = vpop.f32.mrb[0].mxu0
        %499 = vmatprep.mubr.f32.mxu0 0.0
        %500 = vmatmul.mubr.f32.gmra.mrb[0].mxu0 %v358
        %v501 = vpop.f32.mrb[0].mxu0
        %v502 = vadd.f32 %v309, %v501
        %v503 = vpop.f32.mrb[0].mxu0
        %504 = vdwg.mxu0
        %v505 = vmul.f32 %v427, 0.5
        %v506 = vmul.f32 %v432, 0.5
        %v507 = vmul.f32 %v437, 0.5
        %v508 = vmul.f32 %v442, 0.5
        %v509 = vmul.f32 %v447, 0.5
        %v510 = vmul.f32 %v452, 0.5
        %v511 = vmul.f32 %v457, 0.5
        %v512 = vmul.f32 %v462, 0.5
        %v513 = vmul.f32 %v467, 0.5
        %v514 = vmul.f32 %v472, 0.5
        %v515 = vmul.f32 %v477, 0.5
        %v516 = vmul.f32 %v482, 0.5
        %v517 = vmul.f32 %v487, 0.5
        %v518 = vmul.f32 %v492, 0.5
        %v519 = vmul.f32 %v497, 0.5
        %v520 = vmul.f32 %v502, 0.5
        %v521 = vmul.f32 %v427, 0.70710677
        %v522 = vmul.f32 %v432, 0.70710677
        %v523 = vmul.f32 %v437, 0.70710677
        %v524 = vmul.f32 %v442, 0.70710677
        %v525 = vmul.f32 %v447, 0.70710677
        %v526 = vmul.f32 %v452, 0.70710677
        %v527 = vmul.f32 %v457, 0.70710677
        %v528 = vmul.f32 %v462, 0.70710677
        %v529 = vmul.f32 %v467, 0.70710677
        %v530 = vmul.f32 %v472, 0.70710677
        %v531 = vmul.f32 %v477, 0.70710677
        %v532 = vmul.f32 %v482, 0.70710677
        %v533 = vmul.f32 %v487, 0.70710677
        %v534 = vmul.f32 %v492, 0.70710677
        %v535 = vmul.f32 %v497, 0.70710677
        %v536 = vmul.f32 %v502, 0.70710677
        %vm537 = vcmp.ge.f32.partialorder %v521, 0.0
        %vm538 = vcmp.ge.f32.partialorder %v522, 0.0
        %vm539 = vcmp.ge.f32.partialorder %v523, 0.0
        %vm540 = vcmp.ge.f32.partialorder %v524, 0.0
        %vm541 = vcmp.ge.f32.partialorder %v525, 0.0
        %vm542 = vcmp.ge.f32.partialorder %v526, 0.0
        %vm543 = vcmp.ge.f32.partialorder %v527, 0.0
        %vm544 = vcmp.ge.f32.partialorder %v528, 0.0
        %vm545 = vcmp.ge.f32.partialorder %v529, 0.0
        %vm546 = vcmp.ge.f32.partialorder %v530, 0.0
        %vm547 = vcmp.ge.f32.partialorder %v531, 0.0
        %vm548 = vcmp.ge.f32.partialorder %v532, 0.0
        %vm549 = vcmp.ge.f32.partialorder %v533, 0.0
        %vm550 = vcmp.ge.f32.partialorder %v534, 0.0
        %vm551 = vcmp.ge.f32.partialorder %v535, 0.0
        %vm552 = vcmp.ge.f32.partialorder %v536, 0.0
        %v553 = vsel %vm537, 1.0, -1.0
        %v554 = vsel %vm538, 1.0, -1.0
        %v555 = vsel %vm539, 1.0, -1.0
        %v556 = vsel %vm540, 1.0, -1.0
        %v557 = vsel %vm541, 1.0, -1.0
        %v558 = vsel %vm542, 1.0, -1.0
        %v559 = vsel %vm543, 1.0, -1.0
        %v560 = vsel %vm544, 1.0, -1.0
        %v561 = vsel %vm545, 1.0, -1.0
        %v562 = vsel %vm546, 1.0, -1.0
        %v563 = vsel %vm547, 1.0, -1.0
        %v564 = vsel %vm548, 1.0, -1.0
        %v565 = vsel %vm549, 1.0, -1.0
        %v566 = vsel %vm550, 1.0, -1.0
        %v567 = vsel %vm551, 1.0, -1.0
        %v568 = vsel %vm552, 1.0, -1.0
        %v569 = vand.u32 2147483647, %v521
        %v570 = vand.u32 2147483647, %v522
        %v571 = vand.u32 2147483647, %v523
        %v572 = vand.u32 2147483647, %v524
        %v573 = vand.u32 2147483647, %v525
        %v574 = vand.u32 2147483647, %v526
        %v575 = vand.u32 2147483647, %v527
        %v576 = vand.u32 2147483647, %v528
        %v577 = vand.u32 2147483647, %v529
        %v578 = vand.u32 2147483647, %v530
        %v579 = vand.u32 2147483647, %v531
        %v580 = vand.u32 2147483647, %v532
        %v581 = vand.u32 2147483647, %v533
        %v582 = vand.u32 2147483647, %v534
        %v583 = vand.u32 2147483647, %v535
        %v584 = vand.u32 2147483647, %v536
        %v585 = vmul.f32 %v569, 0.3275911
        %v586 = vmul.f32 %v570, 0.3275911
        %v587 = vmul.f32 %v571, 0.3275911
        %v588 = vmul.f32 %v572, 0.3275911
        %v589 = vmul.f32 %v573, 0.3275911
        %v590 = vmul.f32 %v574, 0.3275911
        %v591 = vmul.f32 %v575, 0.3275911
        %v592 = vmul.f32 %v576, 0.3275911
        %v593 = vmul.f32 %v577, 0.3275911
        %v594 = vmul.f32 %v578, 0.3275911
        %v595 = vmul.f32 %v579, 0.3275911
        %v596 = vmul.f32 %v580, 0.3275911
        %v597 = vmul.f32 %v581, 0.3275911
        %v598 = vmul.f32 %v582, 0.3275911
        %v599 = vmul.f32 %v583, 0.3275911
        %v600 = vmul.f32 %v584, 0.3275911
        %v601 = vadd.f32 %v585, 1.0
        %v602 = vadd.f32 %v586, 1.0
        %v603 = vadd.f32 %v587, 1.0
        %v604 = vadd.f32 %v588, 1.0
        %v605 = vadd.f32 %v589, 1.0
        %v606 = vadd.f32 %v590, 1.0
        %v607 = vadd.f32 %v591, 1.0
        %v608 = vadd.f32 %v592, 1.0
        %v609 = vadd.f32 %v593, 1.0
        %v610 = vadd.f32 %v594, 1.0
        %v611 = vadd.f32 %v595, 1.0
        %v612 = vadd.f32 %v596, 1.0
        %v613 = vadd.f32 %v597, 1.0
        %v614 = vadd.f32 %v598, 1.0
        %v615 = vadd.f32 %v599, 1.0
        %v616 = vadd.f32 %v600, 1.0
        %v617 = vrcp.pop %v601
        %v618 = vmul.f32 1.0, %v617
        %v619 = vrcp.pop %v602
        %v620 = vmul.f32 1.0, %v619
        %v621 = vrcp.pop %v603
        %v622 = vmul.f32 1.0, %v621
        %v623 = vrcp.pop %v604
        %v624 = vmul.f32 1.0, %v623
        %v625 = vrcp.pop %v605
        %v626 = vmul.f32 1.0, %v625
        %v627 = vrcp.pop %v606
        %v628 = vmul.f32 1.0, %v627
        %v629 = vrcp.pop %v607
        %v630 = vmul.f32 1.0, %v629
        %v631 = vrcp.pop %v608
        %v632 = vmul.f32 1.0, %v631
        %v633 = vrcp.pop %v609
        %v634 = vmul.f32 1.0, %v633
        %v635 = vrcp.pop %v610
        %v636 = vmul.f32 1.0, %v635
        %v637 = vrcp.pop %v611
        %v638 = vmul.f32 1.0, %v637
        %v639 = vrcp.pop %v612
        %v640 = vmul.f32 1.0, %v639
        %v641 = vrcp.pop %v613
        %v642 = vmul.f32 1.0, %v641
        %v643 = vrcp.pop %v614
        %v644 = vmul.f32 1.0, %v643
        %v645 = vrcp.pop %v615
        %v646 = vmul.f32 1.0, %v645
        %v647 = vrcp.pop %v616
        %v648 = vmul.f32 1.0, %v647
        %v649 = vmul.f32 %v618, 1.0614054
        %v650 = vmul.f32 %v620, 1.0614054
        %v651 = vmul.f32 %v622, 1.0614054
        %v652 = vmul.f32 %v624, 1.0614054
        %v653 = vmul.f32 %v626, 1.0614054
        %v654 = vmul.f32 %v628, 1.0614054
        %v655 = vmul.f32 %v630, 1.0614054
        %v656 = vmul.f32 %v632, 1.0614054
        %v657 = vmul.f32 %v634, 1.0614054
        %v658 = vmul.f32 %v636, 1.0614054
        %v659 = vmul.f32 %v638, 1.0614054
        %v660 = vmul.f32 %v640, 1.0614054
        %v661 = vmul.f32 %v642, 1.0614054
        %v662 = vmul.f32 %v644, 1.0614054
        %v663 = vmul.f32 %v646, 1.0614054
        %v664 = vmul.f32 %v648, 1.0614054
        %v665 = vadd.f32 %v649, -1.4531521
        %v666 = vadd.f32 %v650, -1.4531521
        %v667 = vadd.f32 %v651, -1.4531521
        %v668 = vadd.f32 %v652, -1.4531521
        %v669 = vadd.f32 %v653, -1.4531521
        %v670 = vadd.f32 %v654, -1.4531521
        %v671 = vadd.f32 %v655, -1.4531521
        %v672 = vadd.f32 %v656, -1.4531521
        %v673 = vadd.f32 %v657, -1.4531521
        %v674 = vadd.f32 %v658, -1.4531521
        %v675 = vadd.f32 %v659, -1.4531521
        %v676 = vadd.f32 %v660, -1.4531521
        %v677 = vadd.f32 %v661, -1.4531521
        %v678 = vadd.f32 %v662, -1.4531521
        %v679 = vadd.f32 %v663, -1.4531521
        %v680 = vadd.f32 %v664, -1.4531521
        %v681 = vmul.f32 %v665, %v618
        %v682 = vmul.f32 %v666, %v620
        %v683 = vmul.f32 %v667, %v622
        %v684 = vmul.f32 %v668, %v624
        %v685 = vmul.f32 %v669, %v626
        %v686 = vmul.f32 %v670, %v628
        %v687 = vmul.f32 %v671, %v630
        %v688 = vmul.f32 %v672, %v632
        %v689 = vmul.f32 %v673, %v634
        %v690 = vmul.f32 %v674, %v636
        %v691 = vmul.f32 %v675, %v638
        %v692 = vmul.f32 %v676, %v640
        %v693 = vmul.f32 %v677, %v642
        %v694 = vmul.f32 %v678, %v644
        %v695 = vmul.f32 %v679, %v646
        %v696 = vmul.f32 %v680, %v648
        %v697 = vadd.f32 %v681, 1.4214138
        %v698 = vadd.f32 %v682, 1.4214138
        %v699 = vadd.f32 %v683, 1.4214138
        %v700 = vadd.f32 %v684, 1.4214138
        %v701 = vadd.f32 %v685, 1.4214138
        %v702 = vadd.f32 %v686, 1.4214138
        %v703 = vadd.f32 %v687, 1.4214138
        %v704 = vadd.f32 %v688, 1.4214138
        %v705 = vadd.f32 %v689, 1.4214138
        %v706 = vadd.f32 %v690, 1.4214138
        %v707 = vadd.f32 %v691, 1.4214138
        %v708 = vadd.f32 %v692, 1.4214138
        %v709 = vadd.f32 %v693, 1.4214138
        %v710 = vadd.f32 %v694, 1.4214138
        %v711 = vadd.f32 %v695, 1.4214138
        %v712 = vadd.f32 %v696, 1.4214138
        %v713 = vmul.f32 %v697, %v618
        %v714 = vmul.f32 %v698, %v620
        %v715 = vmul.f32 %v699, %v622
        %v716 = vmul.f32 %v700, %v624
        %v717 = vmul.f32 %v701, %v626
        %v718 = vmul.f32 %v702, %v628
        %v719 = vmul.f32 %v703, %v630
        %v720 = vmul.f32 %v704, %v632
        %v721 = vmul.f32 %v705, %v634
        %v722 = vmul.f32 %v706, %v636
        %v723 = vmul.f32 %v707, %v638
        %v724 = vmul.f32 %v708, %v640
        %v725 = vmul.f32 %v709, %v642
        %v726 = vmul.f32 %v710, %v644
        %v727 = vmul.f32 %v711, %v646
        %v728 = vmul.f32 %v712, %v648
        %v729 = vadd.f32 %v713, -0.28449672
        %v730 = vadd.f32 %v714, -0.28449672
        %v731 = vadd.f32 %v715, -0.28449672
        %v732 = vadd.f32 %v716, -0.28449672
        %v733 = vadd.f32 %v717, -0.28449672
        %v734 = vadd.f32 %v718, -0.28449672
        %v735 = vadd.f32 %v719, -0.28449672
        %v736 = vadd.f32 %v720, -0.28449672
        %v737 = vadd.f32 %v721, -0.28449672
        %v738 = vadd.f32 %v722, -0.28449672
        %v739 = vadd.f32 %v723, -0.28449672
        %v740 = vadd.f32 %v724, -0.28449672
        %v741 = vadd.f32 %v725, -0.28449672
        %v742 = vadd.f32 %v726, -0.28449672
        %v743 = vadd.f32 %v727, -0.28449672
        %v744 = vadd.f32 %v728, -0.28449672
        %v745 = vmul.f32 %v729, %v618
        %v746 = vmul.f32 %v730, %v620
        %v747 = vmul.f32 %v731, %v622
        %v748 = vmul.f32 %v732, %v624
        %v749 = vmul.f32 %v733, %v626
        %v750 = vmul.f32 %v734, %v628
        %v751 = vmul.f32 %v735, %v630
        %v752 = vmul.f32 %v736, %v632
        %v753 = vmul.f32 %v737, %v634
        %v754 = vmul.f32 %v738, %v636
        %v755 = vmul.f32 %v739, %v638
        %v756 = vmul.f32 %v740, %v640
        %v757 = vmul.f32 %v741, %v642
        %v758 = vmul.f32 %v742, %v644
        %v759 = vmul.f32 %v743, %v646
        %v760 = vmul.f32 %v744, %v648
        %v761 = vadd.f32 %v745, 0.2548296
        %v762 = vadd.f32 %v746, 0.2548296
        %v763 = vadd.f32 %v747, 0.2548296
        %v764 = vadd.f32 %v748, 0.2548296
        %v765 = vadd.f32 %v749, 0.2548296
        %v766 = vadd.f32 %v750, 0.2548296
        %v767 = vadd.f32 %v751, 0.2548296
        %v768 = vadd.f32 %v752, 0.2548296
        %v769 = vadd.f32 %v753, 0.2548296
        %v770 = vadd.f32 %v754, 0.2548296
        %v771 = vadd.f32 %v755, 0.2548296
        %v772 = vadd.f32 %v756, 0.2548296
        %v773 = vadd.f32 %v757, 0.2548296
        %v774 = vadd.f32 %v758, 0.2548296
        %v775 = vadd.f32 %v759, 0.2548296
        %v776 = vadd.f32 %v760, 0.2548296
        %v777 = vmul.f32 %v761, %v618
        %v778 = vmul.f32 %v762, %v620
        %v779 = vmul.f32 %v763, %v622
        %v780 = vmul.f32 %v764, %v624
        %v781 = vmul.f32 %v765, %v626
        %v782 = vmul.f32 %v766, %v628
        %v783 = vmul.f32 %v767, %v630
        %v784 = vmul.f32 %v768, %v632
        %v785 = vmul.f32 %v769, %v634
        %v786 = vmul.f32 %v770, %v636
        %v787 = vmul.f32 %v771, %v638
        %v788 = vmul.f32 %v772, %v640
        %v789 = vmul.f32 %v773, %v642
        %v790 = vmul.f32 %v774, %v644
        %v791 = vmul.f32 %v775, %v646
        %v792 = vmul.f32 %v776, %v648
        %v793 = vsub.f32 0.0, %v569
        %v794 = vsub.f32 0.0, %v570
        %v795 = vsub.f32 0.0, %v571
        %v796 = vsub.f32 0.0, %v572
        %v797 = vsub.f32 0.0, %v573
        %v798 = vsub.f32 0.0, %v574
        %v799 = vsub.f32 0.0, %v575
        %v800 = vsub.f32 0.0, %v576
        %v801 = vsub.f32 0.0, %v577
        %v802 = vsub.f32 0.0, %v578
        %v803 = vsub.f32 0.0, %v579
        %v804 = vsub.f32 0.0, %v580
        %v805 = vsub.f32 0.0, %v581
        %v806 = vsub.f32 0.0, %v582
        %v807 = vsub.f32 0.0, %v583
        %v808 = vsub.f32 0.0, %v584
        %v809 = vmul.f32 %v793, %v569
        %v810 = vmul.f32 %v794, %v570
        %v811 = vmul.f32 %v795, %v571
        %v812 = vmul.f32 %v796, %v572
        %v813 = vmul.f32 %v797, %v573
        %v814 = vmul.f32 %v798, %v574
        %v815 = vmul.f32 %v799, %v575
        %v816 = vmul.f32 %v800, %v576
        %v817 = vmul.f32 %v801, %v577
        %v818 = vmul.f32 %v802, %v578
        %v819 = vmul.f32 %v803, %v579
        %v820 = vmul.f32 %v804, %v580
        %v821 = vmul.f32 %v805, %v581
        %v822 = vmul.f32 %v806, %v582
        %v823 = vmul.f32 %v807, %v583
        %v824 = vmul.f32 %v808, %v584
        %v825 = vmul.f32 %v809, 1.442695
        %v826 = vpow.pop %v825
        %v827 = vmul.f32 %v810, 1.442695
        %v828 = vpow.pop %v827
        %v829 = vmul.f32 %v811, 1.442695
        %v830 = vpow.pop %v829
        %v831 = vmul.f32 %v812, 1.442695
        %v832 = vpow.pop %v831
        %v833 = vmul.f32 %v813, 1.442695
        %v834 = vpow.pop %v833
        %v835 = vmul.f32 %v814, 1.442695
        %v836 = vpow.pop %v835
        %v837 = vmul.f32 %v815, 1.442695
        %v838 = vpow.pop %v837
        %v839 = vmul.f32 %v816, 1.442695
        %v840 = vpow.pop %v839
        %v841 = vmul.f32 %v817, 1.442695
        %v842 = vpow.pop %v841
        %v843 = vmul.f32 %v818, 1.442695
        %v844 = vpow.pop %v843
        %v845 = vmul.f32 %v819, 1.442695
        %v846 = vpow.pop %v845
        %v847 = vmul.f32 %v820, 1.442695
        %v848 = vpow.pop %v847
        %v849 = vmul.f32 %v821, 1.442695
        %v850 = vpow.pop %v849
        %v851 = vmul.f32 %v822, 1.442695
        %v852 = vpow.pop %v851
        %v853 = vmul.f32 %v823, 1.442695
        %v854 = vpow.pop %v853
        %v855 = vmul.f32 %v824, 1.442695
        %v856 = vpow.pop %v855
        %v857 = vmul.f32 %v777, %v826
        %v858 = vmul.f32 %v778, %v828
        %v859 = vmul.f32 %v779, %v830
        %v860 = vmul.f32 %v780, %v832
        %v861 = vmul.f32 %v781, %v834
        %v862 = vmul.f32 %v782, %v836
        %v863 = vmul.f32 %v783, %v838
        %v864 = vmul.f32 %v784, %v840
        %v865 = vmul.f32 %v785, %v842
        %v866 = vmul.f32 %v786, %v844
        %v867 = vmul.f32 %v787, %v846
        %v868 = vmul.f32 %v788, %v848
        %v869 = vmul.f32 %v789, %v850
        %v870 = vmul.f32 %v790, %v852
        %v871 = vmul.f32 %v791, %v854
        %v872 = vmul.f32 %v792, %v856
        %v873 = vsub.f32 1.0, %v857
        %v874 = vsub.f32 1.0, %v858
        %v875 = vsub.f32 1.0, %v859
        %v876 = vsub.f32 1.0, %v860
        %v877 = vsub.f32 1.0, %v861
        %v878 = vsub.f32 1.0, %v862
        %v879 = vsub.f32 1.0, %v863
        %v880 = vsub.f32 1.0, %v864
        %v881 = vsub.f32 1.0, %v865
        %v882 = vsub.f32 1.0, %v866
        %v883 = vsub.f32 1.0, %v867
        %v884 = vsub.f32 1.0, %v868
        %v885 = vsub.f32 1.0, %v869
        %v886 = vsub.f32 1.0, %v870
        %v887 = vsub.f32 1.0, %v871
        %v888 = vsub.f32 1.0, %v872
        %v889 = vmul.f32 %v553, %v873
        %v890 = vmul.f32 %v554, %v874
        %v891 = vmul.f32 %v555, %v875
        %v892 = vmul.f32 %v556, %v876
        %v893 = vmul.f32 %v557, %v877
        %v894 = vmul.f32 %v558, %v878
        %v895 = vmul.f32 %v559, %v879
        %v896 = vmul.f32 %v560, %v880
        %v897 = vmul.f32 %v561, %v881
        %v898 = vmul.f32 %v562, %v882
        %v899 = vmul.f32 %v563, %v883
        %v900 = vmul.f32 %v564, %v884
        %v901 = vmul.f32 %v565, %v885
        %v902 = vmul.f32 %v566, %v886
        %v903 = vmul.f32 %v567, %v887
        %v904 = vmul.f32 %v568, %v888
        %v905 = vadd.f32 %v889, 1.0
        %v906 = vadd.f32 %v890, 1.0
        %v907 = vadd.f32 %v891, 1.0
        %v908 = vadd.f32 %v892, 1.0
        %v909 = vadd.f32 %v893, 1.0
        %v910 = vadd.f32 %v894, 1.0
        %v911 = vadd.f32 %v895, 1.0
        %v912 = vadd.f32 %v896, 1.0
        %v913 = vadd.f32 %v897, 1.0
        %v914 = vadd.f32 %v898, 1.0
        %v915 = vadd.f32 %v899, 1.0
        %v916 = vadd.f32 %v900, 1.0
        %v917 = vadd.f32 %v901, 1.0
        %v918 = vadd.f32 %v902, 1.0
        %v919 = vadd.f32 %v903, 1.0
        %v920 = vadd.f32 %v904, 1.0
        %v921 = vmul.f32 %v505, %v905
        %v922 = vmul.f32 %v506, %v906
        %v923 = vmul.f32 %v507, %v907
        %v924 = vmul.f32 %v508, %v908
        %v925 = vmul.f32 %v509, %v909
        %v926 = vmul.f32 %v510, %v910
        %v927 = vmul.f32 %v511, %v911
        %v928 = vmul.f32 %v512, %v912
        %v929 = vmul.f32 %v513, %v913
        %v930 = vmul.f32 %v514, %v914
        %v931 = vmul.f32 %v515, %v915
        %v932 = vmul.f32 %v516, %v916
        %v933 = vmul.f32 %v517, %v917
        %v934 = vmul.f32 %v518, %v918
        %v935 = vmul.f32 %v519, %v919
        %v936 = vmul.f32 %v520, %v920
        %v937 = vld [vmem:[%s3] sm:$0xff]
        %v938 = vld [vmem:[%s3 + $0x8] sm:$0xff]
        %v939 = vld [vmem:[%s3 + $0x10] sm:$0xff]
        %v940 = vld [vmem:[%s3 + $0x18] sm:$0xff]
        %v941 = vld [vmem:[%s3 + $0x20] sm:$0xff]
        %v942 = vld [vmem:[%s3 + $0x28] sm:$0xff]
        %v943 = vld [vmem:[%s3 + $0x30] sm:$0xff]
        %v944 = vld [vmem:[%s3 + $0x38] sm:$0xff]
        %v945 = vld [vmem:[%s3 + $0x40] sm:$0xff]
        %v946 = vld [vmem:[%s3 + $0x48] sm:$0xff]
        %v947 = vld [vmem:[%s3 + $0x50] sm:$0xff]
        %v948 = vld [vmem:[%s3 + $0x58] sm:$0xff]
        %v949 = vld [vmem:[%s3 + $0x60] sm:$0xff]
        %v950 = vld [vmem:[%s3 + $0x68] sm:$0xff]
        %v951 = vld [vmem:[%s3 + $0x70] sm:$0xff]
        %v952 = vld [vmem:[%s3 + $0x78] sm:$0xff]
        %v953 = vld [vmem:[%s4] sm:$0x1]
        %v955 = vlaneseq
        %v956 = vshrl.u32 %v955, 7
        %v957 = vsub.s32 0, %v956
        %v958 = vrot.slane %v953, %v957
        %960 = vmatprep.subr.mxu0 0.0
        %961 = vmatpush1.msra.mxu0 %v937
        %962 = vmatprep.subr.mxu0 0.0
        %963 = vmatpush1.msra.mxu0 %v938
        %964 = vmatprep.subr.mxu0 0.0
        %965 = vmatpush1.msra.mxu0 %v939
        %966 = vmatprep.subr.mxu0 0.0
        %967 = vmatpush1.msra.mxu0 %v940
        %968 = vmatprep.subr.mxu0 0.0
        %969 = vmatpush1.msra.mxu0 %v941
        %970 = vmatprep.subr.mxu0 0.0
        %971 = vmatpush1.msra.mxu0 %v942
        %972 = vmatprep.subr.mxu0 0.0
        %973 = vmatpush1.msra.mxu0 %v943
        %974 = vmatprep.subr.mxu0 0.0
        %975 = vmatpush1.msra.mxu0 %v944
        %976 = vmatprep.subr.mxu0 0.0
        %977 = vmatpush1.msra.mxu0 %v945
        %978 = vmatprep.subr.mxu0 0.0
        %979 = vmatpush1.msra.mxu0 %v946
        %980 = vmatprep.subr.mxu0 0.0
        %981 = vmatpush1.msra.mxu0 %v947
        %982 = vmatprep.subr.mxu0 0.0
        %983 = vmatpush1.msra.mxu0 %v948
        %984 = vmatprep.subr.mxu0 0.0
        %985 = vmatpush1.msra.mxu0 %v949
        %986 = vmatprep.subr.mxu0 0.0
        %987 = vmatpush1.msra.mxu0 %v950
        %988 = vmatprep.subr.mxu0 0.0
        %989 = vmatpush1.msra.mxu0 %v951
        %990 = vmatprep.subr.mxu0 0.0
        %991 = vmatpush1.msra.mxu0 %v952
        %992 = vmatprep.subr.mxu0 0.0
        %993 = vmatpush1.msra.mxu0 0.0
        %994 = vmatprep.subr.mxu0 0.0
        %995 = vmatpush1.msra.mxu0 0.0
        %996 = vmatprep.subr.mxu0 0.0
        %997 = vmatpush1.msra.mxu0 0.0
        %998 = vmatprep.subr.mxu0 0.0
        %999 = vmatpush1.msra.mxu0 0.0
        %1000 = vmatprep.subr.mxu0 0.0
        %1001 = vmatpush1.msra.mxu0 0.0
        %1002 = vmatprep.subr.mxu0 0.0
        %1003 = vmatpush1.msra.mxu0 0.0
        %1004 = vmatprep.subr.mxu0 0.0
        %1005 = vmatpush1.msra.mxu0 0.0
        %1006 = vmatprep.subr.mxu0 0.0
        %1007 = vmatpush1.msra.mxu0 0.0
        %1008 = vmatprep.subr.mxu0 0.0
        %1009 = vmatpush1.msra.mxu0 0.0
        %1010 = vmatprep.subr.mxu0 0.0
        %1011 = vmatpush1.msra.mxu0 0.0
        %1012 = vmatprep.subr.mxu0 0.0
        %1013 = vmatpush1.msra.mxu0 0.0
        %1014 = vmatprep.subr.mxu0 0.0
        %1015 = vmatpush1.msra.mxu0 0.0
        %1016 = vmatprep.subr.mxu0 0.0
        %1017 = vmatpush1.msra.mxu0 0.0
        %1018 = vmatprep.subr.mxu0 0.0
        %1019 = vmatpush1.msra.mxu0 0.0
        %1020 = vmatprep.subr.mxu0 0.0
        %1021 = vmatpush1.msra.mxu0 0.0
        %1022 = vmatprep.subr.mxu0 0.0
        %1023 = vmatpush1.msra.mxu0 0.0
        %1024 = vmatprep.mubr.f32.mxu0 0.0
        %1025 = vmatmul.mubr.f32.gmra.mrb[0].mxu0 %v921
        %v1026 = vpop.f32.mrb[0].mxu0
        %v1027 = vadd.f32 %v958, %v1026
        %v1028 = vpop.f32.mrb[0].mxu0
        %1029 = vmatprep.mubr.f32.mxu0 0.0
        %1030 = vmatmul.mubr.f32.gmra.mrb[0].mxu0 %v922
        %v1031 = vpop.f32.mrb[0].mxu0
        %v1032 = vadd.f32 %v958, %v1031
        %v1033 = vpop.f32.mrb[0].mxu0
        %1034 = vmatprep.mubr.f32.mxu0 0.0
        %1035 = vmatmul.mubr.f32.gmra.mrb[0].mxu0 %v923
        %v1036 = vpop.f32.mrb[0].mxu0
        %v1037 = vadd.f32 %v958, %v1036
        %v1038 = vpop.f32.mrb[0].mxu0
        %1039 = vmatprep.mubr.f32.mxu0 0.0
        %1040 = vmatmul.mubr.f32.gmra.mrb[0].mxu0 %v924
        %v1041 = vpop.f32.mrb[0].mxu0
        %v1042 = vadd.f32 %v958, %v1041
        %v1043 = vpop.f32.mrb[0].mxu0
        %1044 = vmatprep.mubr.f32.mxu0 0.0
        %1045 = vmatmul.mubr.f32.gmra.mrb[0].mxu0 %v925
        %v1046 = vpop.f32.mrb[0].mxu0
        %v1047 = vadd.f32 %v958, %v1046
        %v1048 = vpop.f32.mrb[0].mxu0
        %1049 = vmatprep.mubr.f32.mxu0 0.0
        %1050 = vmatmul.mubr.f32.gmra.mrb[0].mxu0 %v926
        %v1051 = vpop.f32.mrb[0].mxu0
        %v1052 = vadd.f32 %v958, %v1051
        %v1053 = vpop.f32.mrb[0].mxu0
        %1054 = vmatprep.mubr.f32.mxu0 0.0
        %1055 = vmatmul.mubr.f32.gmra.mrb[0].mxu0 %v927
        %v1056 = vpop.f32.mrb[0].mxu0
        %v1057 = vadd.f32 %v958, %v1056
        %v1058 = vpop.f32.mrb[0].mxu0
        %1059 = vmatprep.mubr.f32.mxu0 0.0
        %1060 = vmatmul.mubr.f32.gmra.mrb[0].mxu0 %v928
        %v1061 = vpop.f32.mrb[0].mxu0
        %v1062 = vadd.f32 %v958, %v1061
        %v1063 = vpop.f32.mrb[0].mxu0
        %1064 = vmatprep.mubr.f32.mxu0 0.0
        %1065 = vmatmul.mubr.f32.gmra.mrb[0].mxu0 %v929
        %v1066 = vpop.f32.mrb[0].mxu0
        %v1067 = vadd.f32 %v958, %v1066
        %v1068 = vpop.f32.mrb[0].mxu0
        %1069 = vmatprep.mubr.f32.mxu0 0.0
        %1070 = vmatmul.mubr.f32.gmra.mrb[0].mxu0 %v930
        %v1071 = vpop.f32.mrb[0].mxu0
        %v1072 = vadd.f32 %v958, %v1071
        %v1073 = vpop.f32.mrb[0].mxu0
        %1074 = vmatprep.mubr.f32.mxu0 0.0
        %1075 = vmatmul.mubr.f32.gmra.mrb[0].mxu0 %v931
        %v1076 = vpop.f32.mrb[0].mxu0
        %v1077 = vadd.f32 %v958, %v1076
        %v1078 = vpop.f32.mrb[0].mxu0
        %1079 = vmatprep.mubr.f32.mxu0 0.0
        %1080 = vmatmul.mubr.f32.gmra.mrb[0].mxu0 %v932
        %v1081 = vpop.f32.mrb[0].mxu0
        %v1082 = vadd.f32 %v958, %v1081
        %v1083 = vpop.f32.mrb[0].mxu0
        %1084 = vmatprep.mubr.f32.mxu0 0.0
        %1085 = vmatmul.mubr.f32.gmra.mrb[0].mxu0 %v933
        %v1086 = vpop.f32.mrb[0].mxu0
        %v1087 = vadd.f32 %v958, %v1086
        %v1088 = vpop.f32.mrb[0].mxu0
        %1089 = vmatprep.mubr.f32.mxu0 0.0
        %1090 = vmatmul.mubr.f32.gmra.mrb[0].mxu0 %v934
        %v1091 = vpop.f32.mrb[0].mxu0
        %v1092 = vadd.f32 %v958, %v1091
        %v1093 = vpop.f32.mrb[0].mxu0
        %1094 = vmatprep.mubr.f32.mxu0 0.0
        %1095 = vmatmul.mubr.f32.gmra.mrb[0].mxu0 %v935
        %v1096 = vpop.f32.mrb[0].mxu0
        %v1097 = vadd.f32 %v958, %v1096
        %v1098 = vpop.f32.mrb[0].mxu0
        %1099 = vmatprep.mubr.f32.mxu0 0.0
        %1100 = vmatmul.mubr.f32.gmra.mrb[0].mxu0 %v936
        %v1101 = vpop.f32.mrb[0].mxu0
        %v1102 = vadd.f32 %v958, %v1101
        %v1103 = vpop.f32.mrb[0].mxu0
        %1104 = vdwg.mxu0
        %v1105 = vadd.f32 %v1027, %v427
        %v1106 = vadd.f32 %v1032, %v432
        %v1107 = vadd.f32 %v1037, %v437
        %v1108 = vadd.f32 %v1042, %v442
        %v1109 = vadd.f32 %v1047, %v447
        %v1110 = vadd.f32 %v1052, %v452
        %v1111 = vadd.f32 %v1057, %v457
        %v1112 = vadd.f32 %v1062, %v462
        %v1113 = vadd.f32 %v1067, %v467
        %v1114 = vadd.f32 %v1072, %v472
        %v1115 = vadd.f32 %v1077, %v477
        %v1116 = vadd.f32 %v1082, %v482
        %v1117 = vadd.f32 %v1087, %v487
        %v1118 = vadd.f32 %v1092, %v492
        %v1119 = vadd.f32 %v1097, %v497
        %v1120 = vadd.f32 %v1102, %v502
        %1121 = vadd.xlane.f32.xlu0 %v1105
        %v1122 = vpop.xlane.xlu0 %1121
        %1123 = vadd.xlane.f32.xlu0 %v1106
        %v1124 = vpop.xlane.xlu0 %1123
        %1125 = vadd.xlane.f32.xlu0 %v1107
        %v1126 = vpop.xlane.xlu0 %1125
        %1127 = vadd.xlane.f32.xlu0 %v1108
        %v1128 = vpop.xlane.xlu0 %1127
        %1129 = vadd.xlane.f32.xlu0 %v1109
        %v1130 = vpop.xlane.xlu0 %1129
        %1131 = vadd.xlane.f32.xlu0 %v1110
        %v1132 = vpop.xlane.xlu0 %1131
        %1133 = vadd.xlane.f32.xlu0 %v1111
        %v1134 = vpop.xlane.xlu0 %1133
        %1135 = vadd.xlane.f32.xlu0 %v1112
        %v1136 = vpop.xlane.xlu0 %1135
        %1137 = vadd.xlane.f32.xlu0 %v1113
        %v1138 = vpop.xlane.xlu0 %1137
        %1139 = vadd.xlane.f32.xlu0 %v1114
        %v1140 = vpop.xlane.xlu0 %1139
        %1141 = vadd.xlane.f32.xlu0 %v1115
        %v1142 = vpop.xlane.xlu0 %1141
        %1143 = vadd.xlane.f32.xlu0 %v1116
        %v1144 = vpop.xlane.xlu0 %1143
        %1145 = vadd.xlane.f32.xlu0 %v1117
        %v1146 = vpop.xlane.xlu0 %1145
        %1147 = vadd.xlane.f32.xlu0 %v1118
        %v1148 = vpop.xlane.xlu0 %1147
        %1149 = vadd.xlane.f32.xlu0 %v1119
        %v1150 = vpop.xlane.xlu0 %1149
        %1151 = vadd.xlane.f32.xlu0 %v1120
        %v1152 = vpop.xlane.xlu0 %1151
        %v1153 = vrcp.pop 128.0
        %v1154 = vmul.f32 %v1122, %v1153
        %v1155 = vmul.f32 %v1124, %v1153
        %v1156 = vmul.f32 %v1126, %v1153
        %v1157 = vmul.f32 %v1128, %v1153
        %v1158 = vmul.f32 %v1130, %v1153
        %v1159 = vmul.f32 %v1132, %v1153
        %v1160 = vmul.f32 %v1134, %v1153
        %v1161 = vmul.f32 %v1136, %v1153
        %v1162 = vmul.f32 %v1138, %v1153
        %v1163 = vmul.f32 %v1140, %v1153
        %v1164 = vmul.f32 %v1142, %v1153
        %v1165 = vmul.f32 %v1144, %v1153
        %v1166 = vmul.f32 %v1146, %v1153
        %v1167 = vmul.f32 %v1148, %v1153
        %v1168 = vmul.f32 %v1150, %v1153
        %v1169 = vmul.f32 %v1152, %v1153
        %v1170 = vsub.f32 %v1105, %v1154
        %v1171 = vsub.f32 %v1106, %v1155
        %v1172 = vsub.f32 %v1107, %v1156
        %v1173 = vsub.f32 %v1108, %v1157
        %v1174 = vsub.f32 %v1109, %v1158
        %v1175 = vsub.f32 %v1110, %v1159
        %v1176 = vsub.f32 %v1111, %v1160
        %v1177 = vsub.f32 %v1112, %v1161
        %v1178 = vsub.f32 %v1113, %v1162
        %v1179 = vsub.f32 %v1114, %v1163
        %v1180 = vsub.f32 %v1115, %v1164
        %v1181 = vsub.f32 %v1116, %v1165
        %v1182 = vsub.f32 %v1117, %v1166
        %v1183 = vsub.f32 %v1118, %v1167
        %v1184 = vsub.f32 %v1119, %v1168
        %v1185 = vsub.f32 %v1120, %v1169
        %v1186 = vmul.f32 %v1170, %v1170
        %v1187 = vmul.f32 %v1171, %v1171
        %v1188 = vmul.f32 %v1172, %v1172
        %v1189 = vmul.f32 %v1173, %v1173
        %v1190 = vmul.f32 %v1174, %v1174
        %v1191 = vmul.f32 %v1175, %v1175
        %v1192 = vmul.f32 %v1176, %v1176
        %v1193 = vmul.f32 %v1177, %v1177
        %v1194 = vmul.f32 %v1178, %v1178
        %v1195 = vmul.f32 %v1179, %v1179
        %v1196 = vmul.f32 %v1180, %v1180
        %v1197 = vmul.f32 %v1181, %v1181
        %v1198 = vmul.f32 %v1182, %v1182
        %v1199 = vmul.f32 %v1183, %v1183
        %v1200 = vmul.f32 %v1184, %v1184
        %v1201 = vmul.f32 %v1185, %v1185
        %1202 = vadd.xlane.f32.xlu0 %v1186
        %v1203 = vpop.xlane.xlu0 %1202
        %1204 = vadd.xlane.f32.xlu0 %v1187
        %v1205 = vpop.xlane.xlu0 %1204
        %1206 = vadd.xlane.f32.xlu0 %v1188
        %v1207 = vpop.xlane.xlu0 %1206
        %1208 = vadd.xlane.f32.xlu0 %v1189
        %v1209 = vpop.xlane.xlu0 %1208
        %1210 = vadd.xlane.f32.xlu0 %v1190
        %v1211 = vpop.xlane.xlu0 %1210
        %1212 = vadd.xlane.f32.xlu0 %v1191
        %v1213 = vpop.xlane.xlu0 %1212
        %1214 = vadd.xlane.f32.xlu0 %v1192
        %v1215 = vpop.xlane.xlu0 %1214
        %1216 = vadd.xlane.f32.xlu0 %v1193
        %v1217 = vpop.xlane.xlu0 %1216
        %1218 = vadd.xlane.f32.xlu0 %v1194
        %v1219 = vpop.xlane.xlu0 %1218
        %1220 = vadd.xlane.f32.xlu0 %v1195
        %v1221 = vpop.xlane.xlu0 %1220
        %1222 = vadd.xlane.f32.xlu0 %v1196
        %v1223 = vpop.xlane.xlu0 %1222
        %1224 = vadd.xlane.f32.xlu0 %v1197
        %v1225 = vpop.xlane.xlu0 %1224
        %1226 = vadd.xlane.f32.xlu0 %v1198
        %v1227 = vpop.xlane.xlu0 %1226
        %1228 = vadd.xlane.f32.xlu0 %v1199
        %v1229 = vpop.xlane.xlu0 %1228
        %1230 = vadd.xlane.f32.xlu0 %v1200
        %v1231 = vpop.xlane.xlu0 %1230
        %1232 = vadd.xlane.f32.xlu0 %v1201
        %v1233 = vpop.xlane.xlu0 %1232
        %v1234 = vmul.f32 %v1203, %v1153
        %v1235 = vmul.f32 %v1205, %v1153
        %v1236 = vmul.f32 %v1207, %v1153
        %v1237 = vmul.f32 %v1209, %v1153
        %v1238 = vmul.f32 %v1211, %v1153
        %v1239 = vmul.f32 %v1213, %v1153
        %v1240 = vmul.f32 %v1215, %v1153
        %v1241 = vmul.f32 %v1217, %v1153
        %v1242 = vmul.f32 %v1219, %v1153
        %v1243 = vmul.f32 %v1221, %v1153
        %v1244 = vmul.f32 %v1223, %v1153
        %v1245 = vmul.f32 %v1225, %v1153
        %v1246 = vmul.f32 %v1227, %v1153
        %v1247 = vmul.f32 %v1229, %v1153
        %v1248 = vmul.f32 %v1231, %v1153
        %v1249 = vmul.f32 %v1233, %v1153
        %v1250 = vadd.f32 %v1234, 1e-05
        %v1251 = vadd.f32 %v1235, 1e-05
        %v1252 = vadd.f32 %v1236, 1e-05
        %v1253 = vadd.f32 %v1237, 1e-05
        %v1254 = vadd.f32 %v1238, 1e-05
        %v1255 = vadd.f32 %v1239, 1e-05
        %v1256 = vadd.f32 %v1240, 1e-05
        %v1257 = vadd.f32 %v1241, 1e-05
        %v1258 = vadd.f32 %v1242, 1e-05
        %v1259 = vadd.f32 %v1243, 1e-05
        %v1260 = vadd.f32 %v1244, 1e-05
        %v1261 = vadd.f32 %v1245, 1e-05
        %v1262 = vadd.f32 %v1246, 1e-05
        %v1263 = vadd.f32 %v1247, 1e-05
        %v1264 = vadd.f32 %v1248, 1e-05
        %v1265 = vadd.f32 %v1249, 1e-05
        %v1266 = vrsqrt.pop %v1250
        %v1267 = vrsqrt.pop %v1251
        %v1268 = vrsqrt.pop %v1252
        %v1269 = vrsqrt.pop %v1253
        %v1270 = vrsqrt.pop %v1254
        %v1271 = vrsqrt.pop %v1255
        %v1272 = vrsqrt.pop %v1256
        %v1273 = vrsqrt.pop %v1257
        %v1274 = vrsqrt.pop %v1258
        %v1275 = vrsqrt.pop %v1259
        %v1276 = vrsqrt.pop %v1260
        %v1277 = vrsqrt.pop %v1261
        %v1278 = vrsqrt.pop %v1262
        %v1279 = vrsqrt.pop %v1263
        %v1280 = vrsqrt.pop %v1264
        %v1281 = vrsqrt.pop %v1265
        %v1282 = vmul.f32 %v1170, %v1266
        %v1283 = vmul.f32 %v1171, %v1267
        %v1284 = vmul.f32 %v1172, %v1268
        %v1285 = vmul.f32 %v1173, %v1269
        %v1286 = vmul.f32 %v1174, %v1270
        %v1287 = vmul.f32 %v1175, %v1271
        %v1288 = vmul.f32 %v1176, %v1272
        %v1289 = vmul.f32 %v1177, %v1273
        %v1290 = vmul.f32 %v1178, %v1274
        %v1291 = vmul.f32 %v1179, %v1275
        %v1292 = vmul.f32 %v1180, %v1276
        %v1293 = vmul.f32 %v1181, %v1277
        %v1294 = vmul.f32 %v1182, %v1278
        %v1295 = vmul.f32 %v1183, %v1279
        %v1296 = vmul.f32 %v1184, %v1280
        %v1297 = vmul.f32 %v1185, %v1281
        %v1298 = vld [vmem:[%s5] sm:$0x1]
        %v1300 = vlaneseq
        %v1301 = vshrl.u32 %v1300, 7
        %v1302 = vsub.s32 0, %v1301
        %v1303 = vrot.slane %v1298, %v1302
        %v1305 = vmul.f32 %v1282, %v1303
        %v1306 = vmul.f32 %v1283, %v1303
        %v1307 = vmul.f32 %v1284, %v1303
        %v1308 = vmul.f32 %v1285, %v1303
        %v1309 = vmul.f32 %v1286, %v1303
        %v1310 = vmul.f32 %v1287, %v1303
        %v1311 = vmul.f32 %v1288, %v1303
        %v1312 = vmul.f32 %v1289, %v1303
        %v1313 = vmul.f32 %v1290, %v1303
        %v1314 = vmul.f32 %v1291, %v1303
        %v1315 = vmul.f32 %v1292, %v1303
        %v1316 = vmul.f32 %v1293, %v1303
        %v1317 = vmul.f32 %v1294, %v1303
        %v1318 = vmul.f32 %v1295, %v1303
        %v1319 = vmul.f32 %v1296, %v1303
        %v1320 = vmul.f32 %v1297, %v1303
        %v1321 = vld [vmem:[%s6] sm:$0x1]
        %v1323 = vlaneseq
        %v1324 = vshrl.u32 %v1323, 7
        %v1325 = vsub.s32 0, %v1324
        %v1326 = vrot.slane %v1321, %v1325
        %v1328 = vadd.f32 %v1305, %v1326
        %v1329 = vadd.f32 %v1306, %v1326
        %v1330 = vadd.f32 %v1307, %v1326
        %v1331 = vadd.f32 %v1308, %v1326
        %v1332 = vadd.f32 %v1309, %v1326
        %v1333 = vadd.f32 %v1310, %v1326
        %v1334 = vadd.f32 %v1311, %v1326
        %v1335 = vadd.f32 %v1312, %v1326
        %v1336 = vadd.f32 %v1313, %v1326
        %v1337 = vadd.f32 %v1314, %v1326
        %v1338 = vadd.f32 %v1315, %v1326
        %v1339 = vadd.f32 %v1316, %v1326
        %v1340 = vadd.f32 %v1317, %v1326
        %v1341 = vadd.f32 %v1318, %v1326
        %v1342 = vadd.f32 %v1319, %v1326
        %v1343 = vadd.f32 %v1320, %v1326
        %1344 = vst [vmem:[%s272] sm:$0xff] %v1328
        %1345 = vst [vmem:[%s272 + $0x8] sm:$0xff] %v1329
        %1346 = vst [vmem:[%s272 + $0x10] sm:$0xff] %v1330
        %1347 = vst [vmem:[%s272 + $0x18] sm:$0xff] %v1331
        %1348 = vst [vmem:[%s272 + $0x20] sm:$0xff] %v1332
        %1349 = vst [vmem:[%s272 + $0x28] sm:$0xff] %v1333
        %1350 = vst [vmem:[%s272 + $0x30] sm:$0xff] %v1334
        %1351 = vst [vmem:[%s272 + $0x38] sm:$0xff] %v1335
        %1352 = vst [vmem:[%s272 + $0x40] sm:$0xff] %v1336
        %1353 = vst [vmem:[%s272 + $0x48] sm:$0xff] %v1337
        %1354 = vst [vmem:[%s272 + $0x50] sm:$0xff] %v1338
        %1355 = vst [vmem:[%s272 + $0x58] sm:$0xff] %v1339
        %1356 = vst [vmem:[%s272 + $0x60] sm:$0xff] %v1340
        %1357 = vst [vmem:[%s272 + $0x68] sm:$0xff] %v1341
        %1358 = vst [vmem:[%s272 + $0x70] sm:$0xff] %v1342
        %1359 = vst [vmem:[%s272 + $0x78] sm:$0xff] %v1343
        %s1360 = sand.u32 %s181, 1
        %s1361 = scalar_lea.sflag [#allocation3], %s1360
        %s1362 = sand.u32 %s181, 1
        %s1363 = smul.addr %s1362, 128
        %s1364 = scalar_lea.vmem [#allocation2], %s1363
        // Predicated region
        $region49: #{tpu_custom_call.1} parent=47 // pred_check
          %p1365 = pneg %p191
        $region50: #{tpu_custom_call.1} parent=47 // pred_check_branch
          %1367 = sbr.rel (%p1365) target = $region52
        $region51: #{tpu_custom_call.1} parent=47 // pred_region
          %s1368 = smul.u32 16, %s21
          %s1370 = ssub.s32 2048, 2048
          %1371 = vsyncadd %s1361, %s1370
          %s1372 = smul.addr %s1368, 128
          %s1373 = scalar_lea.hbm %s7, %s1372
          %s1374 = sshll.u32 %s1364, 4
          %s1375 = int_to_ptr.vmem [resolvable:$true] %s1374
          %1380 = dma.vmem_to_hbm [thread:$0]  %s1375, 2048, %s1373, %s1361, 128, 128, 8
        $region52: #{tpu_custom_call.1} parent=47 // pred_fallthru
          _
      $region48: #{tpu_custom_call.1} parent=5 // pred_fallthru
        _
      %p1381 = scmp.le.s32.totalorder 2, %s16
      // Predicated region
      $region53: #{tpu_custom_call.1} parent=5 // pred_check
        %p1382 = pneg %p1381
      $region54: #{tpu_custom_call.1} parent=5 // pred_check_branch
        %1384 = sbr.rel (%p1382) target = $region56
      $region55: #{tpu_custom_call.1} parent=5 // pred_region
        %s1385 = ssub.s32 %s16, 2
        // Predicated region
        $region57: #{tpu_custom_call.1} parent=55 // pred_check
          %p1386 = pneg %p197
        $region58: #{tpu_custom_call.1} parent=55 // pred_check_branch
          %1388 = sbr.rel (%p1386) target = $region60
        $region59: #{tpu_custom_call.1} parent=55 // pred_region
          %s1389 = sand.u32 %s182, 1
          %s1390 = scalar_lea.sflag [#allocation3], %s1389
          %s1391 = sand.u32 %s182, 1
          %s1392 = smul.addr %s1391, 128
          %s1393 = scalar_lea.vmem [#allocation2], %s1392
          %1394 = dma.done %s1390, 2048
        $region60: #{tpu_custom_call.1} parent=55 // pred_fallthru
          _
      $region56: #{tpu_custom_call.1} parent=5 // pred_fallthru
        _
    $region6: #{tpu_custom_call.1} parent=1 // loop_footer
      %s20 = sadd.s32 1, %s16
    $region7: #{tpu_custom_call.1} parent=1 // loop_footer_branch
      %15 = sbr.rel target = $region3
    $region8: #{tpu_custom_call.1} parent=1 // loop_exit
      _
    %1395 = vsyncpa [#allocation3], 1
    %s1396 = scalar_lea.sflag [#allocation3], 1
    %1397 = vsyncpa %s1396, 1

// kernel: tpu_custom_call.1
$region0: #{tpu_custom_call.1}
  #allocation0 [shape = 'u32[]', space=smem, size = 0x4, offset = 0x4, fixed_abs, tag = 'smem constant byte address 0x4 - core index']
  #allocation1 [shape = 'u32[144,128]{1,0:T(1,128)}', space=vmem, size = 0x12000, scoped, tag = 'internal scratch']
  %s0 = inlined_call_operand.vmem [shape: f32[256,64], index: 0, kind: input, shape index: {}]
  %s1 = inlined_call_operand.vmem [shape: f32[64,128], index: 1, kind: input, shape index: {}]
  %s2 = inlined_call_operand.vmem [shape: f32[1,128], index: 2, kind: input, shape index: {}]
  %s3 = inlined_call_operand.vmem [shape: f32[128,128], index: 3, kind: input, shape index: {}]
  %s4 = inlined_call_operand.vmem [shape: f32[1,128], index: 4, kind: input, shape index: {}]
  %s5 = inlined_call_operand.vmem [shape: f32[1,128], index: 5, kind: input, shape index: {}]
  %s6 = inlined_call_operand.vmem [shape: f32[1,128], index: 6, kind: input, shape index: {}]
  %s7 = inlined_call_operand.hbm [shape: f32[256,128], index: 7, kind: output, shape index: {}]
  %s8 = sld [smem:[#allocation0]]
  $region61: #{tpu_custom_call.1} parent=0
    _
  %s10 = ssub.s32 1, %s8
  %s11 = scalar_select 0, %s10, %s8
  $region1: #{tpu_custom_call.1} parent=0
    #allocation2 [shape = 'u8[131072]{0}', space=vmem, size = 0x20000, scoped, tag = 'output window, operand 0']
    #allocation3 [shape = 's32[2]{0}', space=sflag, size = 0x8, scoped, tag = 'scoped memory for tpu_custom_call.1']
    %12 = vsyncpa [#allocation3], 0
    %s13 = scalar_lea.sflag [#allocation3], 1
    %14 = vsyncpa %s13, 0
    loop: start=0, step=1, limit=4
    $region2: #{tpu_custom_call.1} parent=1 // loop_pre_header
      _
    $region3: #{tpu_custom_call.1} parent=1 // loop_header
      %s16 = sphi 0, %s20
      %p17 = scmp.ge.s32.totalorder %s16, 4
      %s26 = sphi 0, %s28
      %s29 = sphi 0, %s26
      %s30 = sphi 0, %s29
      %s46 = sphi 0, %s30
      %s50 = sphi 0, %s50
      %s52 = sphi 0, %s50
      %s53 = sphi 0, %s52
      %s67 = sphi 0, %s53
      %s71 = sphi 0, %s71
      %s73 = sphi 0, %s71
      %s74 = sphi 0, %s73
      %s88 = sphi 0, %s74
      %s92 = sphi 0, %s92
      %s94 = sphi 0, %s92
      %s95 = sphi 0, %s94
      %s109 = sphi 0, %s95
      %s113 = sphi 0, %s113
      %s115 = sphi 0, %s113
      %s116 = sphi 0, %s115
      %s130 = sphi 0, %s116
      %s134 = sphi 0, %s134
      %s136 = sphi 0, %s134
      %s137 = sphi 0, %s136
      %s151 = sphi 0, %s137
      %s155 = sphi 0, %s155
      %s157 = sphi 0, %s155
      %s158 = sphi 0, %s157
      %s172 = sphi 0, %s158
      %s178 = sphi 0, %s180
      %s181 = sphi 0, %s178
      %s182 = sphi 0, %s181
      %s198 = sphi 0, %s182
    $region4: #{tpu_custom_call.1} parent=1 // loop_header_branch
      %19 = sbr.rel (%p17) target = $region8
    $region5: #{tpu_custom_call.1} parent=1 // loop_body
      %s21 = ssub.s32 %s16, 1
      %s22 = ssub.s32 %s16, 2
      %s23 = sadd.s32 %s16, 1
      %s24 = ssub.s32 %s16, %s23
      %p25 = scmp.eq.s32.totalorder %s24, 0
      %s27 = sadd.s32 %s26, 1
      %s28 = scalar_select %p25, %s26, %s27
      %p31 = pneg %p25
      %p32 = scmp.eq.s32.totalorder %s16, 1
      %p33 = por %p31, %p32
      %p34 = scmp.ne.s32.totalorder %s26, %s29
      %p35 = scmp.eq.s32.totalorder %s16, 0
      %p36 = por %p34, %p35
      %p37 = scmp.ne.s32.totalorder %s26, %s29
      %p38 = scmp.eq.s32.totalorder %s21, 1
      %p39 = por %p37, %p38
      %p40 = scmp.ne.s32.totalorder %s29, %s30
      %p41 = scmp.eq.s32.totalorder %s21, 0
      %p42 = por %p40, %p41
      %p43 = scmp.ne.s32.totalorder %s29, %s30
      %p44 = scmp.eq.s32.totalorder %s22, 1
      %p45 = por %p43, %p44
      %p47 = scmp.ne.s32.totalorder %s30, %s46
      %p48 = scmp.eq.s32.totalorder %s22, 0
      %p49 = por %p47, %p48
      %s51 = sadd.s32 %s50, 1
      %p54 = scmp.eq.s32.totalorder %s16, 1
      %p55 = scmp.ne.s32.totalorder %s50, %s52
      %p56 = scmp.eq.s32.totalorder %s16, 0
      %p57 = por %p55, %p56
      %p58 = scmp.ne.s32.totalorder %s50, %s52
      %p59 = scmp.eq.s32.totalorder %s21, 1
      %p60 = por %p58, %p59
      %p61 = scmp.ne.s32.totalorder %s52, %s53
      %p62 = scmp.eq.s32.totalorder %s21, 0
      %p63 = por %p61, %p62
      %p64 = scmp.ne.s32.totalorder %s52, %s53
      %p65 = scmp.eq.s32.totalorder %s22, 1
      %p66 = por %p64, %p65
      %p68 = scmp.ne.s32.totalorder %s53, %s67
      %p69 = scmp.eq.s32.totalorder %s22, 0
      %p70 = por %p68, %p69
      %s72 = sadd.s32 %s71, 1
      %p75 = scmp.eq.s32.totalorder %s16, 1
      %p76 = scmp.ne.s32.totalorder %s71, %s73
      %p77 = scmp.eq.s32.totalorder %s16, 0
      %p78 = por %p76, %p77
      %p79 = scmp.ne.s32.totalorder %s71, %s73
      %p80 = scmp.eq.s32.totalorder %s21, 1
      %p81 = por %p79, %p80
      %p82 = scmp.ne.s32.totalorder %s73, %s74
      %p83 = scmp.eq.s32.totalorder %s21, 0
      %p84 = por %p82, %p83
      %p85 = scmp.ne.s32.totalorder %s73, %s74
      %p86 = scmp.eq.s32.totalorder %s22, 1
      %p87 = por %p85, %p86
      %p89 = scmp.ne.s32.totalorder %s74, %s88
      %p90 = scmp.eq.s32.totalorder %s22, 0
      %p91 = por %p89, %p90
      %s93 = sadd.s32 %s92, 1
      %p96 = scmp.eq.s32.totalorder %s16, 1
      %p97 = scmp.ne.s32.totalorder %s92, %s94
      %p98 = scmp.eq.s32.totalorder %s16, 0
      %p99 = por %p97, %p98
      %p100 = scmp.ne.s32.totalorder %s92, %s94
      %p101 = scmp.eq.s32.totalorder %s21, 1
      %p102 = por %p100, %p101
      %p103 = scmp.ne.s32.totalorder %s94, %s95
      %p104 = scmp.eq.s32.totalorder %s21, 0
      %p105 = por %p103, %p104
      %p106 = scmp.ne.s32.totalorder %s94, %s95
      %p107 = scmp.eq.s32.totalorder %s22, 1
      %p108 = por %p106, %p107
      %p110 = scmp.ne.s32.totalorder %s95, %s109
      %p111 = scmp.eq.s32.totalorder %s22, 0
      %p112 = por %p110, %p111
      %s114 = sadd.s32 %s113, 1
      %p117 = scmp.eq.s32.totalorder %s16, 1
      %p118 = scmp.ne.s32.totalorder %s113, %s115
      %p119 = scmp.eq.s32.totalorder %s16, 0
      %p120 = por %p118, %p119
      %p121 = scmp.ne.s32.totalorder %s113, %s115
      %p122 = scmp.eq.s32.totalorder %s21, 1
      %p123 = por %p121, %p122
      %p124 = scmp.ne.s32.totalorder %s115, %s116
      %p125 = scmp.eq.s32.totalorder %s21, 0
      %p126 = por %p124, %p125
      %p127 = scmp.ne.s32.totalorder %s115, %s116
      %p128 = scmp.eq.s32.totalorder %s22, 1
      %p129 = por %p127, %p128
      %p131 = scmp.ne.s32.totalorder %s116, %s130
      %p132 = scmp.eq.s32.totalorder %s22, 0
      %p133 = por %p131, %p132
      %s135 = sadd.s32 %s134, 1
      %p138 = scmp.eq.s32.totalorder %s16, 1
      %p139 = scmp.ne.s32.totalorder %s134, %s136
      %p140 = scmp.eq.s32.totalorder %s16, 0
      %p141 = por %p139, %p140
      %p142 = scmp.ne.s32.totalorder %s134, %s136
      %p143 = scmp.eq.s32.totalorder %s21, 1
      %p144 = por %p142, %p143
      %p145 = scmp.ne.s32.totalorder %s136, %s137
      %p146 = scmp.eq.s32.totalorder %s21, 0
      %p147 = por %p145, %p146
      %p148 = scmp.ne.s32.totalorder %s136, %s137
      %p149 = scmp.eq.s32.totalorder %s22, 1
      %p150 = por %p148, %p149
      %p152 = scmp.ne.s32.totalorder %s137, %s151
      %p153 = scmp.eq.s32.totalorder %s22, 0
      %p154 = por %p152, %p153
      %s156 = sadd.s32 %s155, 1
      %p159 = scmp.eq.s32.totalorder %s16, 1
      %p160 = scmp.ne.s32.totalorder %s155, %s157
      %p161 = scmp.eq.s32.totalorder %s16, 0
      %p162 = por %p160, %p161
      %p163 = scmp.ne.s32.totalorder %s155, %s157
      %p164 = scmp.eq.s32.totalorder %s21, 1
      %p165 = por %p163, %p164
      %p166 = scmp.ne.s32.totalorder %s157, %s158
      %p167 = scmp.eq.s32.totalorder %s21, 0
      %p168 = por %p166, %p167
      %p169 = scmp.ne.s32.totalorder %s157, %s158
      %p170 = scmp.eq.s32.totalorder %s22, 1
      %p171 = por %p169, %p170
      %p173 = scmp.ne.s32.totalorder %s158, %s172
      %p174 = scmp.eq.s32.totalorder %s22, 0
      %p175 = por %p173, %p174
      %s176 = ssub.s32 %s16, %s23
      %p177 = scmp.eq.s32.totalorder %s176, 0
      %s179 = sadd.s32 %s178, 1
      %s180 = scalar_select %p177, %s178, %s179
      %p183 = pneg %p177
      %p184 = scmp.eq.s32.totalorder %s16, 1
      %p185 = por %p183, %p184
      %p186 = scmp.ne.s32.totalorder %s178, %s181
      %p187 = scmp.eq.s32.totalorder %s16, 0
      %p188 = por %p186, %p187
      %p189 = scmp.ne.s32.totalorder %s178, %s181
      %p190 = scmp.eq.s32.totalorder %s21, 1
      %p191 = por %p189, %p190
      %p192 = scmp.ne.s32.totalorder %s181, %s182
      %p193 = scmp.eq.s32.totalorder %s21, 0
      %p194 = por %p192, %p193
      %p195 = scmp.ne.s32.totalorder %s181, %s182
      %p196 = scmp.eq.s32.totalorder %s22, 1
      %p197 = por %p195, %p196
      %p199 = scmp.ne.s32.totalorder %s182, %s198
      %p200 = scmp.eq.s32.totalorder %s22, 0
      %p201 = por %p199, %p200
      %p202 = scmp.le.s32.totalorder 1, %s16
      %p203 = scmp.lt.s32.totalorder %s16, 3
      %p204 = pnand %p202, %p203
      %p205 = pneg %p204
      // Predicated region
      $region9: #{tpu_custom_call.1} parent=5 // pred_check
        _
      $region10: #{tpu_custom_call.1} parent=5 // pred_check_branch
        %207 = sbr.rel (%p204) target = $region12
      $region11: #{tpu_custom_call.1} parent=5 // pred_region
        %s208 = ssub.s32 %s16, 1
        // Predicated region
        $region13: #{tpu_custom_call.1} parent=11 // pred_check
          %p209 = pneg %p63
        $region14: #{tpu_custom_call.1} parent=11 // pred_check_branch
          %211 = sbr.rel (%p209) target = $region16
        $region15: #{tpu_custom_call.1} parent=11 // pred_region
          _
        $region16: #{tpu_custom_call.1} parent=11 // pred_fallthru
          _
        // Predicated region
        $region17: #{tpu_custom_call.1} parent=11 // pred_check
          %p212 = pneg %p84
        $region18: #{tpu_custom_call.1} parent=11 // pred_check_branch
          %214 = sbr.rel (%p212) target = $region20
        $region19: #{tpu_custom_call.1} parent=11 // pred_region
          _
        $region20: #{tpu_custom_call.1} parent=11 // pred_fallthru
          _
        // Predicated region
        $region21: #{tpu_custom_call.1} parent=11 // pred_check
          %p215 = pneg %p105
        $region22: #{tpu_custom_call.1} parent=11 // pred_check_branch
          %217 = sbr.rel (%p215) target = $region24
        $region23: #{tpu_custom_call.1} parent=11 // pred_region
          _
        $region24: #{tpu_custom_call.1} parent=11 // pred_fallthru
          _
        // Predicated region
        $region25: #{tpu_custom_call.1} parent=11 // pred_check
          %p218 = pneg %p126
        $region26: #{tpu_custom_call.1} parent=11 // pred_check_branch
          %220 = sbr.rel (%p218) target = $region28
        $region27: #{tpu_custom_call.1} parent=11 // pred_region
          _
        $region28: #{tpu_custom_call.1} parent=11 // pred_fallthru
          _
        // Predicated region
        $region29: #{tpu_custom_call.1} parent=11 // pred_check
          %p221 = pneg %p147
        $region30: #{tpu_custom_call.1} parent=11 // pred_check_branch
          %223 = sbr.rel (%p221) target = $region32
        $region31: #{tpu_custom_call.1} parent=11 // pred_region
          _
        $region32: #{tpu_custom_call.1} parent=11 // pred_fallthru
          _
        // Predicated region
        $region33: #{tpu_custom_call.1} parent=11 // pred_check
          %p224 = pneg %p168
        $region34: #{tpu_custom_call.1} parent=11 // pred_check_branch
          %226 = sbr.rel (%p224) target = $region36
        $region35: #{tpu_custom_call.1} parent=11 // pred_region
          _
        $region36: #{tpu_custom_call.1} parent=11 // pred_fallthru
          _
      $region12: #{tpu_custom_call.1} parent=5 // pred_fallthru
        _
      %p227 = scmp.lt.s32.totalorder %s16, 2
      // Predicated region
      $region37: #{tpu_custom_call.1} parent=5 // pred_check
        %p228 = pneg %p227
      $region38: #{tpu_custom_call.1} parent=5 // pred_check_branch
        %230 = sbr.rel (%p228) target = $region40
      $region39: #{tpu_custom_call.1} parent=5 // pred_region
        // Predicated region
        $region41: #{tpu_custom_call.1} parent=39 // pred_check
          %p231 = pneg %p36
        $region42: #{tpu_custom_call.1} parent=39 // pred_check_branch
          %233 = sbr.rel (%p231) target = $region44
        $region43: #{tpu_custom_call.1} parent=39 // pred_region
          %s234 = smul.u32 16, %s16
          %p235 = scmp.lt.s32.totalorder %s234, 31
          %s236 = scalar_select %p235, %s234, 31
          %s237 = smul.addr %s236, 8
          %s238 = scalar_lea.vmem %s0, %s237
          %s239 = smul.u32 16, %s16
        $region44: #{tpu_custom_call.1} parent=39 // pred_fallthru
          _
      $region40: #{tpu_custom_call.1} parent=5 // pred_fallthru
        _
      %p240 = scmp.le.s32.totalorder 1, %s16
      %p241 = scmp.lt.s32.totalorder %s16, 3
      %p242 = pnand %p240, %p241
      %p243 = pneg %p242
      // Predicated region
      $region45: #{tpu_custom_call.1} parent=5 // pred_check
        _
      $region46: #{tpu_custom_call.1} parent=5 // pred_check_branch
        %245 = sbr.rel (%p242) target = $region48
      $region47: #{tpu_custom_call.1} parent=5 // pred_region
        %s246 = ssub.s32 %s16, 1
        %s247 = smul.u32 16, %s21
        %p248 = scmp.lt.s32.totalorder %s247, 31
        %s249 = scalar_select %p248, %s247, 31
        %s250 = smul.addr %s249, 8
        %s251 = scalar_lea.vmem %s0, %s250
        %p252 = pneg %p42
        %p253 = pneg %p39
        %p254 = pneg %p63
        %p255 = pneg %p60
        %p256 = pneg %p84
        %p257 = pneg %p81
        %p258 = pneg %p105
        %p259 = pneg %p102
        %p260 = pneg %p126
        %p261 = pneg %p123
        %p262 = pneg %p147
        %p263 = pneg %p144
        %p264 = pneg %p168
        %p265 = pneg %p165
        %p266 = pneg %p194
        %p267 = pneg %p191
        %s268 = sand.u32 %s181, 1
        %s269 = scalar_lea.sflag [#allocation3], %s268
        %s270 = sand.u32 %s181, 1
        %s271 = smul.addr %s270, 128
        %s272 = scalar_lea.vmem [#allocation2], %s271
        %s273 = smul.u32 16, %s21
        %p274 = scmp.lt.s32.totalorder %s273, 31
        %s275 = scalar_select %p274, %s273, 31
        %s276 = smul.addr %s275, 8
        %s277 = scalar_lea.vmem %s0, %s276
        %s278 = smul.u32 16, %s21
        %s279 = smul.u32 16, %s21
        %v280 = vld [vmem:[%s277] sm:$0xff]
        %v281 = vld [vmem:[%s277 + $0x8] sm:$0xff]
        %v282 = vld [vmem:[%s277 + $0x10] sm:$0xff]
        %v283 = vld [vmem:[%s277 + $0x18] sm:$0xff]
        %v284 = vld [vmem:[%s277 + $0x20] sm:$0xff]
        %v285 = vld [vmem:[%s277 + $0x28] sm:$0xff]
        %v286 = vld [vmem:[%s277 + $0x30] sm:$0xff]
        %v287 = vld [vmem:[%s277 + $0x38] sm:$0xff]
        %v288 = vld [vmem:[%s277 + $0x40] sm:$0xff]
        %v289 = vld [vmem:[%s277 + $0x48] sm:$0xff]
        %v290 = vld [vmem:[%s277 + $0x50] sm:$0xff]
        %v291 = vld [vmem:[%s277 + $0x58] sm:$0xff]
        %v292 = vld [vmem:[%s277 + $0x60] sm:$0xff]
        %v293 = vld [vmem:[%s277 + $0x68] sm:$0xff]
        %v294 = vld [vmem:[%s277 + $0x70] sm:$0xff]
        %v295 = vld [vmem:[%s277 + $0x78] sm:$0xff]
        %v296 = vld [vmem:[%s1] sm:$0xff]
        %v297 = vld [vmem:[%s1 + $0x8] sm:$0xff]
        %v298 = vld [vmem:[%s1 + $0x10] sm:$0xff]
        %v299 = vld [vmem:[%s1 + $0x18] sm:$0xff]
        %v300 = vld [vmem:[%s1 + $0x20] sm:$0xff]
        %v301 = vld [vmem:[%s1 + $0x28] sm:$0xff]
        %v302 = vld [vmem:[%s1 + $0x30] sm:$0xff]
        %v303 = vld [vmem:[%s1 + $0x38] sm:$0xff]
        %v304 = vld [vmem:[%s2] sm:$0x1]
        %v306 = vlaneseq
        %v307 = vshrl.u32 %v306, 7
        %v308 = vsub.s32 0, %v307
        %v309 = vrot.slane %v304, %v308
        %vm311 = vcmask 523264
        %v313 = vsel %vm311, %v280, 0
        %v316 = vsel %vm311, %v281, 0
        %v319 = vsel %vm311, %v282, 0
        %v322 = vsel %vm311, %v283, 0
        %v325 = vsel %vm311, %v284, 0
        %v328 = vsel %vm311, %v285, 0
        %v331 = vsel %vm311, %v286, 0
        %v334 = vsel %vm311, %v287, 0
        %v337 = vsel %vm311, %v288, 0
        %v340 = vsel %vm311, %v289, 0
        %v343 = vsel %vm311, %v290, 0
        %v346 = vsel %vm311, %v291, 0
        %v349 = vsel %vm311, %v292, 0
        %v352 = vsel %vm311, %v293, 0
        %v355 = vsel %vm311, %v294, 0
        %v358 = vsel %vm311, %v295, 0
        %360 = vmatprep.subr.mxu0 0.0
        %361 = vmatpush1.msra.mxu0 %v296
        %362 = vmatprep.subr.mxu0 0.0
        %363 = vmatpush1.msra.mxu0 %v297
        %364 = vmatprep.subr.mxu0 0.0
        %365 = vmatpush1.msra.mxu0 %v298
        %366 = vmatprep.subr.mxu0 0.0
        %367 = vmatpush1.msra.mxu0 %v299
        %368 = vmatprep.subr.mxu0 0.0
        %369 = vmatpush1.msra.mxu0 %v300
        %370 = vmatprep.subr.mxu0 0.0
        %371 = vmatpush1.msra.mxu0 %v301
        %372 = vmatprep.subr.mxu0 0.0
        %373 = vmatpush1.msra.mxu0 %v302
        %374 = vmatprep.subr.mxu0 0.0
        %375 = vmatpush1.msra.mxu0 %v303
        %376 = vmatprep.subr.mxu0 0.0
        %377 = vmatpush1.msra.mxu0 0.0
        %378 = vmatprep.subr.mxu0 0.0
        %379 = vmatpush1.msra.mxu0 0.0
        %380 = vmatprep.subr.mxu0 0.0
        %381 = vmatpush1.msra.mxu0 0.0
        %382 = vmatprep.subr.mxu0 0.0
        %383 = vmatpush1.msra.mxu0 0.0
        %384 = vmatprep.subr.mxu0 0.0
        %385 = vmatpush1.msra.mxu0 0.0
        %386 = vmatprep.subr.mxu0 0.0
        %387 = vmatpush1.msra.mxu0 0.0
        %388 = vmatprep.subr.mxu0 0.0
        %389 = vmatpush1.msra.mxu0 0.0
        %390 = vmatprep.subr.mxu0 0.0
        %391 = vmatpush1.msra.mxu0 0.0
        %392 = vmatprep.subr.mxu0 0.0
        %393 = vmatpush1.msra.mxu0 0.0
        %394 = vmatprep.subr.mxu0 0.0
        %395 = vmatpush1.msra.mxu0 0.0
        %396 = vmatprep.subr.mxu0 0.0
        %397 = vmatpush1.msra.mxu0 0.0
        %398 = vmatprep.subr.mxu0 0.0
        %399 = vmatpush1.msra.mxu0 0.0
        %400 = vmatprep.subr.mxu0 0.0
        %401 = vmatpush1.msra.mxu0 0.0
        %402 = vmatprep.subr.mxu0 0.0
        %403 = vmatpush1.msra.mxu0 0.0
        %404 = vmatprep.subr.mxu0 0.0
        %405 = vmatpush1.msra.mxu0 0.0
        %406 = vmatprep.subr.mxu0 0.0
        %407 = vmatpush1.msra.mxu0 0.0
        %408 = vmatprep.subr.mxu0 0.0
        %409 = vmatpush1.msra.mxu0 0.0
        %410 = vmatprep.subr.mxu0 0.0
        %411 = vmatpush1.msra.mxu0 0.0
        %412 = vmatprep.subr.mxu0 0.0
        %413 = vmatpush1.msra.mxu0 0.0
        %414 = vmatprep.subr.mxu0 0.0
        %415 = vmatpush1.msra.mxu0 0.0
        %416 = vmatprep.subr.mxu0 0.0
        %417 = vmatpush1.msra.mxu0 0.0
        %418 = vmatprep.subr.mxu0 0.0
        %419 = vmatpush1.msra.mxu0 0.0
        %420 = vmatprep.subr.mxu0 0.0
        %421 = vmatpush1.msra.mxu0 0.0
        %422 = vmatprep.subr.mxu0 0.0
        %423 = vmatpush1.msra.mxu0 0.0
        %424 = vmatprep.mubr.f32.mxu0 0.0
        %425 = vmatmul.mubr.f32.gmra.mrb[0].mxu0 %v313
        %v426 = vpop.f32.mrb[0].mxu0
        %v427 = vadd.f32 %v309, %v426
        %v428 = vpop.f32.mrb[0].mxu0
        %429 = vmatprep.mubr.f32.mxu0 0.0
        %430 = vmatmul.mubr.f32.gmra.mrb[0].mxu0 %v316
        %v431 = vpop.f32.mrb[0].mxu0
        %v432 = vadd.f32 %v309, %v431
        %v433 = vpop.f32.mrb[0].mxu0
        %434 = vmatprep.mubr.f32.mxu0 0.0
        %435 = vmatmul.mubr.f32.gmra.mrb[0].mxu0 %v319
        %v436 = vpop.f32.mrb[0].mxu0
        %v437 = vadd.f32 %v309, %v436
        %v438 = vpop.f32.mrb[0].mxu0
        %439 = vmatprep.mubr.f32.mxu0 0.0
        %440 = vmatmul.mubr.f32.gmra.mrb[0].mxu0 %v322
        %v441 = vpop.f32.mrb[0].mxu0
        %v442 = vadd.f32 %v309, %v441
        %v443 = vpop.f32.mrb[0].mxu0
        %444 = vmatprep.mubr.f32.mxu0 0.0
        %445 = vmatmul.mubr.f32.gmra.mrb[0].mxu0 %v325
        %v446 = vpop.f32.mrb[0].mxu0
        %v447 = vadd.f32 %v309, %v446
        %v448 = vpop.f32.mrb[0].mxu0
        %449 = vmatprep.mubr.f32.mxu0 0.0
        %450 = vmatmul.mubr.f32.gmra.mrb[0].mxu0 %v328
        %v451 = vpop.f32.mrb[0].mxu0
        %v452 = vadd.f32 %v309, %v451
        %v453 = vpop.f32.mrb[0].mxu0
        %454 = vmatprep.mubr.f32.mxu0 0.0
        %455 = vmatmul.mubr.f32.gmra.mrb[0].mxu0 %v331
        %v456 = vpop.f32.mrb[0].mxu0
        %v457 = vadd.f32 %v309, %v456
        %v458 = vpop.f32.mrb[0].mxu0
        %459 = vmatprep.mubr.f32.mxu0 0.0
        %460 = vmatmul.mubr.f32.gmra.mrb[0].mxu0 %v334
        %v461 = vpop.f32.mrb[0].mxu0
        %v462 = vadd.f32 %v309, %v461
        %v463 = vpop.f32.mrb[0].mxu0
        %464 = vmatprep.mubr.f32.mxu0 0.0
        %465 = vmatmul.mubr.f32.gmra.mrb[0].mxu0 %v337
        %v466 = vpop.f32.mrb[0].mxu0
        %v467 = vadd.f32 %v309, %v466
        %v468 = vpop.f32.mrb[0].mxu0
        %469 = vmatprep.mubr.f32.mxu0 0.0
        %470 = vmatmul.mubr.f32.gmra.mrb[0].mxu0 %v340
        %v471 = vpop.f32.mrb[0].mxu0
        %v472 = vadd.f32 %v309, %v471
        %v473 = vpop.f32.mrb[0].mxu0
        %474 = vmatprep.mubr.f32.mxu0 0.0
        %475 = vmatmul.mubr.f32.gmra.mrb[0].mxu0 %v343
        %v476 = vpop.f32.mrb[0].mxu0
        %v477 = vadd.f32 %v309, %v476
        %v478 = vpop.f32.mrb[0].mxu0
        %479 = vmatprep.mubr.f32.mxu0 0.0
        %480 = vmatmul.mubr.f32.gmra.mrb[0].mxu0 %v346
        %v481 = vpop.f32.mrb[0].mxu0
        %v482 = vadd.f32 %v309, %v481
        %v483 = vpop.f32.mrb[0].mxu0
        %484 = vmatprep.mubr.f32.mxu0 0.0
        %485 = vmatmul.mubr.f32.gmra.mrb[0].mxu0 %v349
        %v486 = vpop.f32.mrb[0].mxu0
        %v487 = vadd.f32 %v309, %v486
        %v488 = vpop.f32.mrb[0].mxu0
        %489 = vmatprep.mubr.f32.mxu0 0.0
        %490 = vmatmul.mubr.f32.gmra.mrb[0].mxu0 %v352
        %v491 = vpop.f32.mrb[0].mxu0
        %v492 = vadd.f32 %v309, %v491
        %v493 = vpop.f32.mrb[0].mxu0
        %494 = vmatprep.mubr.f32.mxu0 0.0
        %495 = vmatmul.mubr.f32.gmra.mrb[0].mxu0 %v355
        %v496 = vpop.f32.mrb[0].mxu0
        %v497 = vadd.f32 %v309, %v496
        %v498 = vpop.f32.mrb[0].mxu0
        %499 = vmatprep.mubr.f32.mxu0 0.0
        %500 = vmatmul.mubr.f32.gmra.mrb[0].mxu0 %v358
        %v501 = vpop.f32.mrb[0].mxu0
        %v502 = vadd.f32 %v309, %v501
        %v503 = vpop.f32.mrb[0].mxu0
        %504 = vdwg.mxu0
        %v505 = vmul.f32 %v427, 0.5
        %v506 = vmul.f32 %v432, 0.5
        %v507 = vmul.f32 %v437, 0.5
        %v508 = vmul.f32 %v442, 0.5
        %v509 = vmul.f32 %v447, 0.5
        %v510 = vmul.f32 %v452, 0.5
        %v511 = vmul.f32 %v457, 0.5
        %v512 = vmul.f32 %v462, 0.5
        %v513 = vmul.f32 %v467, 0.5
        %v514 = vmul.f32 %v472, 0.5
        %v515 = vmul.f32 %v477, 0.5
        %v516 = vmul.f32 %v482, 0.5
        %v517 = vmul.f32 %v487, 0.5
        %v518 = vmul.f32 %v492, 0.5
        %v519 = vmul.f32 %v497, 0.5
        %v520 = vmul.f32 %v502, 0.5
        %v521 = vmul.f32 %v427, 0.70710677
        %v522 = vmul.f32 %v432, 0.70710677
        %v523 = vmul.f32 %v437, 0.70710677
        %v524 = vmul.f32 %v442, 0.70710677
        %v525 = vmul.f32 %v447, 0.70710677
        %v526 = vmul.f32 %v452, 0.70710677
        %v527 = vmul.f32 %v457, 0.70710677
        %v528 = vmul.f32 %v462, 0.70710677
        %v529 = vmul.f32 %v467, 0.70710677
        %v530 = vmul.f32 %v472, 0.70710677
        %v531 = vmul.f32 %v477, 0.70710677
        %v532 = vmul.f32 %v482, 0.70710677
        %v533 = vmul.f32 %v487, 0.70710677
        %v534 = vmul.f32 %v492, 0.70710677
        %v535 = vmul.f32 %v497, 0.70710677
        %v536 = vmul.f32 %v502, 0.70710677
        %vm537 = vcmp.ge.f32.partialorder %v521, 0.0
        %vm538 = vcmp.ge.f32.partialorder %v522, 0.0
        %vm539 = vcmp.ge.f32.partialorder %v523, 0.0
        %vm540 = vcmp.ge.f32.partialorder %v524, 0.0
        %vm541 = vcmp.ge.f32.partialorder %v525, 0.0
        %vm542 = vcmp.ge.f32.partialorder %v526, 0.0
        %vm543 = vcmp.ge.f32.partialorder %v527, 0.0
        %vm544 = vcmp.ge.f32.partialorder %v528, 0.0
        %vm545 = vcmp.ge.f32.partialorder %v529, 0.0
        %vm546 = vcmp.ge.f32.partialorder %v530, 0.0
        %vm547 = vcmp.ge.f32.partialorder %v531, 0.0
        %vm548 = vcmp.ge.f32.partialorder %v532, 0.0
        %vm549 = vcmp.ge.f32.partialorder %v533, 0.0
        %vm550 = vcmp.ge.f32.partialorder %v534, 0.0
        %vm551 = vcmp.ge.f32.partialorder %v535, 0.0
        %vm552 = vcmp.ge.f32.partialorder %v536, 0.0
        %v553 = vsel %vm537, 1.0, -1.0
        %v554 = vsel %vm538, 1.0, -1.0
        %v555 = vsel %vm539, 1.0, -1.0
        %v556 = vsel %vm540, 1.0, -1.0
        %v557 = vsel %vm541, 1.0, -1.0
        %v558 = vsel %vm542, 1.0, -1.0
        %v559 = vsel %vm543, 1.0, -1.0
        %v560 = vsel %vm544, 1.0, -1.0
        %v561 = vsel %vm545, 1.0, -1.0
        %v562 = vsel %vm546, 1.0, -1.0
        %v563 = vsel %vm547, 1.0, -1.0
        %v564 = vsel %vm548, 1.0, -1.0
        %v565 = vsel %vm549, 1.0, -1.0
        %v566 = vsel %vm550, 1.0, -1.0
        %v567 = vsel %vm551, 1.0, -1.0
        %v568 = vsel %vm552, 1.0, -1.0
        %v569 = vand.u32 2147483647, %v521
        %v570 = vand.u32 2147483647, %v522
        %v571 = vand.u32 2147483647, %v523
        %v572 = vand.u32 2147483647, %v524
        %v573 = vand.u32 2147483647, %v525
        %v574 = vand.u32 2147483647, %v526
        %v575 = vand.u32 2147483647, %v527
        %v576 = vand.u32 2147483647, %v528
        %v577 = vand.u32 2147483647, %v529
        %v578 = vand.u32 2147483647, %v530
        %v579 = vand.u32 2147483647, %v531
        %v580 = vand.u32 2147483647, %v532
        %v581 = vand.u32 2147483647, %v533
        %v582 = vand.u32 2147483647, %v534
        %v583 = vand.u32 2147483647, %v535
        %v584 = vand.u32 2147483647, %v536
        %v585 = vmul.f32 %v569, 0.3275911
        %v586 = vmul.f32 %v570, 0.3275911
        %v587 = vmul.f32 %v571, 0.3275911
        %v588 = vmul.f32 %v572, 0.3275911
        %v589 = vmul.f32 %v573, 0.3275911
        %v590 = vmul.f32 %v574, 0.3275911
        %v591 = vmul.f32 %v575, 0.3275911
        %v592 = vmul.f32 %v576, 0.3275911
        %v593 = vmul.f32 %v577, 0.3275911
        %v594 = vmul.f32 %v578, 0.3275911
        %v595 = vmul.f32 %v579, 0.3275911
        %v596 = vmul.f32 %v580, 0.3275911
        %v597 = vmul.f32 %v581, 0.3275911
        %v598 = vmul.f32 %v582, 0.3275911
        %v599 = vmul.f32 %v583, 0.3275911
        %v600 = vmul.f32 %v584, 0.3275911
        %v601 = vadd.f32 %v585, 1.0
        %v602 = vadd.f32 %v586, 1.0
        %v603 = vadd.f32 %v587, 1.0
        %v604 = vadd.f32 %v588, 1.0
        %v605 = vadd.f32 %v589, 1.0
        %v606 = vadd.f32 %v590, 1.0
        %v607 = vadd.f32 %v591, 1.0
        %v608 = vadd.f32 %v592, 1.0
        %v609 = vadd.f32 %v593, 1.0
        %v610 = vadd.f32 %v594, 1.0
        %v611 = vadd.f32 %v595, 1.0
        %v612 = vadd.f32 %v596, 1.0
        %v613 = vadd.f32 %v597, 1.0
        %v614 = vadd.f32 %v598, 1.0
        %v615 = vadd.f32 %v599, 1.0
        %v616 = vadd.f32 %v600, 1.0
        %v617 = vrcp.pop %v601
        %v618 = vmul.f32 1.0, %v617
        %v619 = vrcp.pop %v602
        %v620 = vmul.f32 1.0, %v619
        %v621 = vrcp.pop %v603
        %v622 = vmul.f32 1.0, %v621
        %v623 = vrcp.pop %v604
        %v624 = vmul.f32 1.0, %v623
        %v625 = vrcp.pop %v605
        %v626 = vmul.f32 1.0, %v625
        %v627 = vrcp.pop %v606
        %v628 = vmul.f32 1.0, %v627
        %v629 = vrcp.pop %v607
        %v630 = vmul.f32 1.0, %v629
        %v631 = vrcp.pop %v608
        %v632 = vmul.f32 1.0, %v631
        %v633 = vrcp.pop %v609
        %v634 = vmul.f32 1.0, %v633
        %v635 = vrcp.pop %v610
        %v636 = vmul.f32 1.0, %v635
        %v637 = vrcp.pop %v611
        %v638 = vmul.f32 1.0, %v637
        %v639 = vrcp.pop %v612
        %v640 = vmul.f32 1.0, %v639
        %v641 = vrcp.pop %v613
        %v642 = vmul.f32 1.0, %v641
        %v643 = vrcp.pop %v614
        %v644 = vmul.f32 1.0, %v643
        %v645 = vrcp.pop %v615
        %v646 = vmul.f32 1.0, %v645
        %v647 = vrcp.pop %v616
        %v648 = vmul.f32 1.0, %v647
        %v649 = vmul.f32 %v618, 1.0614054
        %v650 = vmul.f32 %v620, 1.0614054
        %v651 = vmul.f32 %v622, 1.0614054
        %v652 = vmul.f32 %v624, 1.0614054
        %v653 = vmul.f32 %v626, 1.0614054
        %v654 = vmul.f32 %v628, 1.0614054
        %v655 = vmul.f32 %v630, 1.0614054
        %v656 = vmul.f32 %v632, 1.0614054
        %v657 = vmul.f32 %v634, 1.0614054
        %v658 = vmul.f32 %v636, 1.0614054
        %v659 = vmul.f32 %v638, 1.0614054
        %v660 = vmul.f32 %v640, 1.0614054
        %v661 = vmul.f32 %v642, 1.0614054
        %v662 = vmul.f32 %v644, 1.0614054
        %v663 = vmul.f32 %v646, 1.0614054
        %v664 = vmul.f32 %v648, 1.0614054
        %v665 = vadd.f32 %v649, -1.4531521
        %v666 = vadd.f32 %v650, -1.4531521
        %v667 = vadd.f32 %v651, -1.4531521
        %v668 = vadd.f32 %v652, -1.4531521
        %v669 = vadd.f32 %v653, -1.4531521
        %v670 = vadd.f32 %v654, -1.4531521
        %v671 = vadd.f32 %v655, -1.4531521
        %v672 = vadd.f32 %v656, -1.4531521
        %v673 = vadd.f32 %v657, -1.4531521
        %v674 = vadd.f32 %v658, -1.4531521
        %v675 = vadd.f32 %v659, -1.4531521
        %v676 = vadd.f32 %v660, -1.4531521
        %v677 = vadd.f32 %v661, -1.4531521
        %v678 = vadd.f32 %v662, -1.4531521
        %v679 = vadd.f32 %v663, -1.4531521
        %v680 = vadd.f32 %v664, -1.4531521
        %v681 = vmul.f32 %v665, %v618
        %v682 = vmul.f32 %v666, %v620
        %v683 = vmul.f32 %v667, %v622
        %v684 = vmul.f32 %v668, %v624
        %v685 = vmul.f32 %v669, %v626
        %v686 = vmul.f32 %v670, %v628
        %v687 = vmul.f32 %v671, %v630
        %v688 = vmul.f32 %v672, %v632
        %v689 = vmul.f32 %v673, %v634
        %v690 = vmul.f32 %v674, %v636
        %v691 = vmul.f32 %v675, %v638
        %v692 = vmul.f32 %v676, %v640
        %v693 = vmul.f32 %v677, %v642
        %v694 = vmul.f32 %v678, %v644
        %v695 = vmul.f32 %v679, %v646
        %v696 = vmul.f32 %v680, %v648
        %v697 = vadd.f32 %v681, 1.4214138
        %v698 = vadd.f32 %v682, 1.4214138
        %v699 = vadd.f32 %v683, 1.4214138
        %v700 = vadd.f32 %v684, 1.4214138
        %v701 = vadd.f32 %v685, 1.4214138
        %v702 = vadd.f32 %v686, 1.4214138
        %v703 = vadd.f32 %v687, 1.4214138
        %v704 = vadd.f32 %v688, 1.4214138
        %v705 = vadd.f32 %v689, 1.4214138
        %v706 = vadd.f32 %v690, 1.4214138
        %v707 = vadd.f32 %v691, 1.4214138
        %v708 = vadd.f32 %v692, 1.4214138
        %v709 = vadd.f32 %v693, 1.4214138
        %v710 = vadd.f32 %v694, 1.4214138
        %v711 = vadd.f32 %v695, 1.4214138
        %v712 = vadd.f32 %v696, 1.4214138
        %v713 = vmul.f32 %v697, %v618
        %v714 = vmul.f32 %v698, %v620
        %v715 = vmul.f32 %v699, %v622
        %v716 = vmul.f32 %v700, %v624
        %v717 = vmul.f32 %v701, %v626
        %v718 = vmul.f32 %v702, %v628
        %v719 = vmul.f32 %v703, %v630
        %v720 = vmul.f32 %v704, %v632
        %v721 = vmul.f32 %v705, %v634
        %v722 = vmul.f32 %v706, %v636
        %v723 = vmul.f32 %v707, %v638
        %v724 = vmul.f32 %v708, %v640
        %v725 = vmul.f32 %v709, %v642
        %v726 = vmul.f32 %v710, %v644
        %v727 = vmul.f32 %v711, %v646
        %v728 = vmul.f32 %v712, %v648
        %v729 = vadd.f32 %v713, -0.28449672
        %v730 = vadd.f32 %v714, -0.28449672
        %v731 = vadd.f32 %v715, -0.28449672
        %v732 = vadd.f32 %v716, -0.28449672
        %v733 = vadd.f32 %v717, -0.28449672
        %v734 = vadd.f32 %v718, -0.28449672
        %v735 = vadd.f32 %v719, -0.28449672
        %v736 = vadd.f32 %v720, -0.28449672
        %v737 = vadd.f32 %v721, -0.28449672
        %v738 = vadd.f32 %v722, -0.28449672
        %v739 = vadd.f32 %v723, -0.28449672
        %v740 = vadd.f32 %v724, -0.28449672
        %v741 = vadd.f32 %v725, -0.28449672
        %v742 = vadd.f32 %v726, -0.28449672
        %v743 = vadd.f32 %v727, -0.28449672
        %v744 = vadd.f32 %v728, -0.28449672
        %v745 = vmul.f32 %v729, %v618
        %v746 = vmul.f32 %v730, %v620
        %v747 = vmul.f32 %v731, %v622
        %v748 = vmul.f32 %v732, %v624
        %v749 = vmul.f32 %v733, %v626
        %v750 = vmul.f32 %v734, %v628
        %v751 = vmul.f32 %v735, %v630
        %v752 = vmul.f32 %v736, %v632
        %v753 = vmul.f32 %v737, %v634
        %v754 = vmul.f32 %v738, %v636
        %v755 = vmul.f32 %v739, %v638
        %v756 = vmul.f32 %v740, %v640
        %v757 = vmul.f32 %v741, %v642
        %v758 = vmul.f32 %v742, %v644
        %v759 = vmul.f32 %v743, %v646
        %v760 = vmul.f32 %v744, %v648
        %v761 = vadd.f32 %v745, 0.2548296
        %v762 = vadd.f32 %v746, 0.2548296
        %v763 = vadd.f32 %v747, 0.2548296
        %v764 = vadd.f32 %v748, 0.2548296
        %v765 = vadd.f32 %v749, 0.2548296
        %v766 = vadd.f32 %v750, 0.2548296
        %v767 = vadd.f32 %v751, 0.2548296
        %v768 = vadd.f32 %v752, 0.2548296
        %v769 = vadd.f32 %v753, 0.2548296
        %v770 = vadd.f32 %v754, 0.2548296
        %v771 = vadd.f32 %v755, 0.2548296
        %v772 = vadd.f32 %v756, 0.2548296
        %v773 = vadd.f32 %v757, 0.2548296
        %v774 = vadd.f32 %v758, 0.2548296
        %v775 = vadd.f32 %v759, 0.2548296
        %v776 = vadd.f32 %v760, 0.2548296
        %v777 = vmul.f32 %v761, %v618
        %v778 = vmul.f32 %v762, %v620
        %v779 = vmul.f32 %v763, %v622
        %v780 = vmul.f32 %v764, %v624
        %v781 = vmul.f32 %v765, %v626
        %v782 = vmul.f32 %v766, %v628
        %v783 = vmul.f32 %v767, %v630
        %v784 = vmul.f32 %v768, %v632
        %v785 = vmul.f32 %v769, %v634
        %v786 = vmul.f32 %v770, %v636
        %v787 = vmul.f32 %v771, %v638
        %v788 = vmul.f32 %v772, %v640
        %v789 = vmul.f32 %v773, %v642
        %v790 = vmul.f32 %v774, %v644
        %v791 = vmul.f32 %v775, %v646
        %v792 = vmul.f32 %v776, %v648
        %v793 = vsub.f32 0.0, %v569
        %v794 = vsub.f32 0.0, %v570
        %v795 = vsub.f32 0.0, %v571
        %v796 = vsub.f32 0.0, %v572
        %v797 = vsub.f32 0.0, %v573
        %v798 = vsub.f32 0.0, %v574
        %v799 = vsub.f32 0.0, %v575
        %v800 = vsub.f32 0.0, %v576
        %v801 = vsub.f32 0.0, %v577
        %v802 = vsub.f32 0.0, %v578
        %v803 = vsub.f32 0.0, %v579
        %v804 = vsub.f32 0.0, %v580
        %v805 = vsub.f32 0.0, %v581
        %v806 = vsub.f32 0.0, %v582
        %v807 = vsub.f32 0.0, %v583
        %v808 = vsub.f32 0.0, %v584
        %v809 = vmul.f32 %v793, %v569
        %v810 = vmul.f32 %v794, %v570
        %v811 = vmul.f32 %v795, %v571
        %v812 = vmul.f32 %v796, %v572
        %v813 = vmul.f32 %v797, %v573
        %v814 = vmul.f32 %v798, %v574
        %v815 = vmul.f32 %v799, %v575
        %v816 = vmul.f32 %v800, %v576
        %v817 = vmul.f32 %v801, %v577
        %v818 = vmul.f32 %v802, %v578
        %v819 = vmul.f32 %v803, %v579
        %v820 = vmul.f32 %v804, %v580
        %v821 = vmul.f32 %v805, %v581
        %v822 = vmul.f32 %v806, %v582
        %v823 = vmul.f32 %v807, %v583
        %v824 = vmul.f32 %v808, %v584
        %v825 = vmul.f32 %v809, 1.442695
        %v826 = vpow.pop %v825
        %v827 = vmul.f32 %v810, 1.442695
        %v828 = vpow.pop %v827
        %v829 = vmul.f32 %v811, 1.442695
        %v830 = vpow.pop %v829
        %v831 = vmul.f32 %v812, 1.442695
        %v832 = vpow.pop %v831
        %v833 = vmul.f32 %v813, 1.442695
        %v834 = vpow.pop %v833
        %v835 = vmul.f32 %v814, 1.442695
        %v836 = vpow.pop %v835
        %v837 = vmul.f32 %v815, 1.442695
        %v838 = vpow.pop %v837
        %v839 = vmul.f32 %v816, 1.442695
        %v840 = vpow.pop %v839
        %v841 = vmul.f32 %v817, 1.442695
        %v842 = vpow.pop %v841
        %v843 = vmul.f32 %v818, 1.442695
        %v844 = vpow.pop %v843
        %v845 = vmul.f32 %v819, 1.442695
        %v846 = vpow.pop %v845
        %v847 = vmul.f32 %v820, 1.442695
        %v848 = vpow.pop %v847
        %v849 = vmul.f32 %v821, 1.442695
        %v850 = vpow.pop %v849
        %v851 = vmul.f32 %v822, 1.442695
        %v852 = vpow.pop %v851
        %v853 = vmul.f32 %v823, 1.442695
        %v854 = vpow.pop %v853
        %v855 = vmul.f32 %v824, 1.442695
        %v856 = vpow.pop %v855
        %v857 = vmul.f32 %v777, %v826
        %v858 = vmul.f32 %v778, %v828
        %v859 = vmul.f32 %v779, %v830
        %v860 = vmul.f32 %v780, %v832
        %v861 = vmul.f32 %v781, %v834
        %v862 = vmul.f32 %v782, %v836
        %v863 = vmul.f32 %v783, %v838
        %v864 = vmul.f32 %v784, %v840
        %v865 = vmul.f32 %v785, %v842
        %v866 = vmul.f32 %v786, %v844
        %v867 = vmul.f32 %v787, %v846
        %v868 = vmul.f32 %v788, %v848
        %v869 = vmul.f32 %v789, %v850
        %v870 = vmul.f32 %v790, %v852
        %v871 = vmul.f32 %v791, %v854
        %v872 = vmul.f32 %v792, %v856
        %v873 = vsub.f32 1.0, %v857
        %v874 = vsub.f32 1.0, %v858
        %v875 = vsub.f32 1.0, %v859
        %v876 = vsub.f32 1.0, %v860
        %v877 = vsub.f32 1.0, %v861
        %v878 = vsub.f32 1.0, %v862
        %v879 = vsub.f32 1.0, %v863
        %v880 = vsub.f32 1.0, %v864
        %v881 = vsub.f32 1.0, %v865
        %v882 = vsub.f32 1.0, %v866
        %v883 = vsub.f32 1.0, %v867
        %v884 = vsub.f32 1.0, %v868
        %v885 = vsub.f32 1.0, %v869
        %v886 = vsub.f32 1.0, %v870
        %v887 = vsub.f32 1.0, %v871
        %v888 = vsub.f32 1.0, %v872
        %v889 = vmul.f32 %v553, %v873
        %v890 = vmul.f32 %v554, %v874
        %v891 = vmul.f32 %v555, %v875
        %v892 = vmul.f32 %v556, %v876
        %v893 = vmul.f32 %v557, %v877
        %v894 = vmul.f32 %v558, %v878
        %v895 = vmul.f32 %v559, %v879
        %v896 = vmul.f32 %v560, %v880
        %v897 = vmul.f32 %v561, %v881
        %v898 = vmul.f32 %v562, %v882
        %v899 = vmul.f32 %v563, %v883
        %v900 = vmul.f32 %v564, %v884
        %v901 = vmul.f32 %v565, %v885
        %v902 = vmul.f32 %v566, %v886
        %v903 = vmul.f32 %v567, %v887
        %v904 = vmul.f32 %v568, %v888
        %v905 = vadd.f32 %v889, 1.0
        %v906 = vadd.f32 %v890, 1.0
        %v907 = vadd.f32 %v891, 1.0
        %v908 = vadd.f32 %v892, 1.0
        %v909 = vadd.f32 %v893, 1.0
        %v910 = vadd.f32 %v894, 1.0
        %v911 = vadd.f32 %v895, 1.0
        %v912 = vadd.f32 %v896, 1.0
        %v913 = vadd.f32 %v897, 1.0
        %v914 = vadd.f32 %v898, 1.0
        %v915 = vadd.f32 %v899, 1.0
        %v916 = vadd.f32 %v900, 1.0
        %v917 = vadd.f32 %v901, 1.0
        %v918 = vadd.f32 %v902, 1.0
        %v919 = vadd.f32 %v903, 1.0
        %v920 = vadd.f32 %v904, 1.0
        %v921 = vmul.f32 %v505, %v905
        %v922 = vmul.f32 %v506, %v906
        %v923 = vmul.f32 %v507, %v907
        %v924 = vmul.f32 %v508, %v908
        %v925 = vmul.f32 %v509, %v909
        %v926 = vmul.f32 %v510, %v910
        %v927 = vmul.f32 %v511, %v911
        %v928 = vmul.f32 %v512, %v912
        %v929 = vmul.f32 %v513, %v913
        %v930 = vmul.f32 %v514, %v914
        %v931 = vmul.f32 %v515, %v915
        %v932 = vmul.f32 %v516, %v916
        %v933 = vmul.f32 %v517, %v917
        %v934 = vmul.f32 %v518, %v918
        %v935 = vmul.f32 %v519, %v919
        %v936 = vmul.f32 %v520, %v920
        %v937 = vld [vmem:[%s3] sm:$0xff]
        %v938 = vld [vmem:[%s3 + $0x8] sm:$0xff]
        %v939 = vld [vmem:[%s3 + $0x10] sm:$0xff]
        %v940 = vld [vmem:[%s3 + $0x18] sm:$0xff]
        %v941 = vld [vmem:[%s3 + $0x20] sm:$0xff]
        %v942 = vld [vmem:[%s3 + $0x28] sm:$0xff]
        %v943 = vld [vmem:[%s3 + $0x30] sm:$0xff]
        %v944 = vld [vmem:[%s3 + $0x38] sm:$0xff]
        %v945 = vld [vmem:[%s3 + $0x40] sm:$0xff]
        %v946 = vld [vmem:[%s3 + $0x48] sm:$0xff]
        %v947 = vld [vmem:[%s3 + $0x50] sm:$0xff]
        %v948 = vld [vmem:[%s3 + $0x58] sm:$0xff]
        %v949 = vld [vmem:[%s3 + $0x60] sm:$0xff]
        %v950 = vld [vmem:[%s3 + $0x68] sm:$0xff]
        %v951 = vld [vmem:[%s3 + $0x70] sm:$0xff]
        %v952 = vld [vmem:[%s3 + $0x78] sm:$0xff]
        %v953 = vld [vmem:[%s4] sm:$0x1]
        %v955 = vlaneseq
        %v956 = vshrl.u32 %v955, 7
        %v957 = vsub.s32 0, %v956
        %v958 = vrot.slane %v953, %v957
        %960 = vmatprep.subr.mxu0 0.0
        %961 = vmatpush1.msra.mxu0 %v937
        %962 = vmatprep.subr.mxu0 0.0
        %963 = vmatpush1.msra.mxu0 %v938
        %964 = vmatprep.subr.mxu0 0.0
        %965 = vmatpush1.msra.mxu0 %v939
        %966 = vmatprep.subr.mxu0 0.0
        %967 = vmatpush1.msra.mxu0 %v940
        %968 = vmatprep.subr.mxu0 0.0
        %969 = vmatpush1.msra.mxu0 %v941
        %970 = vmatprep.subr.mxu0 0.0
        %971 = vmatpush1.msra.mxu0 %v942
        %972 = vmatprep.subr.mxu0 0.0
        %973 = vmatpush1.msra.mxu0 %v943
        %974 = vmatprep.subr.mxu0 0.0
        %975 = vmatpush1.msra.mxu0 %v944
        %976 = vmatprep.subr.mxu0 0.0
        %977 = vmatpush1.msra.mxu0 %v945
        %978 = vmatprep.subr.mxu0 0.0
        %979 = vmatpush1.msra.mxu0 %v946
        %980 = vmatprep.subr.mxu0 0.0
        %981 = vmatpush1.msra.mxu0 %v947
        %982 = vmatprep.subr.mxu0 0.0
        %983 = vmatpush1.msra.mxu0 %v948
        %984 = vmatprep.subr.mxu0 0.0
        %985 = vmatpush1.msra.mxu0 %v949
        %986 = vmatprep.subr.mxu0 0.0
        %987 = vmatpush1.msra.mxu0 %v950
        %988 = vmatprep.subr.mxu0 0.0
        %989 = vmatpush1.msra.mxu0 %v951
        %990 = vmatprep.subr.mxu0 0.0
        %991 = vmatpush1.msra.mxu0 %v952
        %992 = vmatprep.subr.mxu0 0.0
        %993 = vmatpush1.msra.mxu0 0.0
        %994 = vmatprep.subr.mxu0 0.0
        %995 = vmatpush1.msra.mxu0 0.0
        %996 = vmatprep.subr.mxu0 0.0
        %997 = vmatpush1.msra.mxu0 0.0
        %998 = vmatprep.subr.mxu0 0.0
        %999 = vmatpush1.msra.mxu0 0.0
        %1000 = vmatprep.subr.mxu0 0.0
        %1001 = vmatpush1.msra.mxu0 0.0
        %1002 = vmatprep.subr.mxu0 0.0
        %1003 = vmatpush1.msra.mxu0 0.0
        %1004 = vmatprep.subr.mxu0 0.0
        %1005 = vmatpush1.msra.mxu0 0.0
        %1006 = vmatprep.subr.mxu0 0.0
        %1007 = vmatpush1.msra.mxu0 0.0
        %1008 = vmatprep.subr.mxu0 0.0
        %1009 = vmatpush1.msra.mxu0 0.0
        %1010 = vmatprep.subr.mxu0 0.0
        %1011 = vmatpush1.msra.mxu0 0.0
        %1012 = vmatprep.subr.mxu0 0.0
        %1013 = vmatpush1.msra.mxu0 0.0
        %1014 = vmatprep.subr.mxu0 0.0
        %1015 = vmatpush1.msra.mxu0 0.0
        %1016 = vmatprep.subr.mxu0 0.0
        %1017 = vmatpush1.msra.mxu0 0.0
        %1018 = vmatprep.subr.mxu0 0.0
        %1019 = vmatpush1.msra.mxu0 0.0
        %1020 = vmatprep.subr.mxu0 0.0
        %1021 = vmatpush1.msra.mxu0 0.0
        %1022 = vmatprep.subr.mxu0 0.0
        %1023 = vmatpush1.msra.mxu0 0.0
        %1024 = vmatprep.mubr.f32.mxu0 0.0
        %1025 = vmatmul.mubr.f32.gmra.mrb[0].mxu0 %v921
        %v1026 = vpop.f32.mrb[0].mxu0
        %v1027 = vadd.f32 %v958, %v1026
        %v1028 = vpop.f32.mrb[0].mxu0
        %1029 = vmatprep.mubr.f32.mxu0 0.0
        %1030 = vmatmul.mubr.f32.gmra.mrb[0].mxu0 %v922
        %v1031 = vpop.f32.mrb[0].mxu0
        %v1032 = vadd.f32 %v958, %v1031
        %v1033 = vpop.f32.mrb[0].mxu0
        %1034 = vmatprep.mubr.f32.mxu0 0.0
        %1035 = vmatmul.mubr.f32.gmra.mrb[0].mxu0 %v923
        %v1036 = vpop.f32.mrb[0].mxu0
        %v1037 = vadd.f32 %v958, %v1036
        %v1038 = vpop.f32.mrb[0].mxu0
        %1039 = vmatprep.mubr.f32.mxu0 0.0
        %1040 = vmatmul.mubr.f32.gmra.mrb[0].mxu0 %v924
        %v1041 = vpop.f32.mrb[0].mxu0
        %v1042 = vadd.f32 %v958, %v1041
        %v1043 = vpop.f32.mrb[0].mxu0
        %1044 = vmatprep.mubr.f32.mxu0 0.0
        %1045 = vmatmul.mubr.f32.gmra.mrb[0].mxu0 %v925
        %v1046 = vpop.f32.mrb[0].mxu0
        %v1047 = vadd.f32 %v958, %v1046
        %v1048 = vpop.f32.mrb[0].mxu0
        %1049 = vmatprep.mubr.f32.mxu0 0.0
        %1050 = vmatmul.mubr.f32.gmra.mrb[0].mxu0 %v926
        %v1051 = vpop.f32.mrb[0].mxu0
        %v1052 = vadd.f32 %v958, %v1051
        %v1053 = vpop.f32.mrb[0].mxu0
        %1054 = vmatprep.mubr.f32.mxu0 0.0
        %1055 = vmatmul.mubr.f32.gmra.mrb[0].mxu0 %v927
        %v1056 = vpop.f32.mrb[0].mxu0
        %v1057 = vadd.f32 %v958, %v1056
        %v1058 = vpop.f32.mrb[0].mxu0
        %1059 = vmatprep.mubr.f32.mxu0 0.0
        %1060 = vmatmul.mubr.f32.gmra.mrb[0].mxu0 %v928
        %v1061 = vpop.f32.mrb[0].mxu0
        %v1062 = vadd.f32 %v958, %v1061
        %v1063 = vpop.f32.mrb[0].mxu0
        %1064 = vmatprep.mubr.f32.mxu0 0.0
        %1065 = vmatmul.mubr.f32.gmra.mrb[0].mxu0 %v929
        %v1066 = vpop.f32.mrb[0].mxu0
        %v1067 = vadd.f32 %v958, %v1066
        %v1068 = vpop.f32.mrb[0].mxu0
        %1069 = vmatprep.mubr.f32.mxu0 0.0
        %1070 = vmatmul.mubr.f32.gmra.mrb[0].mxu0 %v930
        %v1071 = vpop.f32.mrb[0].mxu0
        %v1072 = vadd.f32 %v958, %v1071
        %v1073 = vpop.f32.mrb[0].mxu0
        %1074 = vmatprep.mubr.f32.mxu0 0.0
        %1075 = vmatmul.mubr.f32.gmra.mrb[0].mxu0 %v931
        %v1076 = vpop.f32.mrb[0].mxu0
        %v1077 = vadd.f32 %v958, %v1076
        %v1078 = vpop.f32.mrb[0].mxu0
        %1079 = vmatprep.mubr.f32.mxu0 0.0
        %1080 = vmatmul.mubr.f32.gmra.mrb[0].mxu0 %v932
        %v1081 = vpop.f32.mrb[0].mxu0
        %v1082 = vadd.f32 %v958, %v1081
        %v1083 = vpop.f32.mrb[0].mxu0
        %1084 = vmatprep.mubr.f32.mxu0 0.0
        %1085 = vmatmul.mubr.f32.gmra.mrb[0].mxu0 %v933
        %v1086 = vpop.f32.mrb[0].mxu0
        %v1087 = vadd.f32 %v958, %v1086
        %v1088 = vpop.f32.mrb[0].mxu0
        %1089 = vmatprep.mubr.f32.mxu0 0.0
        %1090 = vmatmul.mubr.f32.gmra.mrb[0].mxu0 %v934
        %v1091 = vpop.f32.mrb[0].mxu0
        %v1092 = vadd.f32 %v958, %v1091
        %v1093 = vpop.f32.mrb[0].mxu0
        %1094 = vmatprep.mubr.f32.mxu0 0.0
        %1095 = vmatmul.mubr.f32.gmra.mrb[0].mxu0 %v935
        %v1096 = vpop.f32.mrb[0].mxu0
        %v1097 = vadd.f32 %v958, %v1096
        %v1098 = vpop.f32.mrb[0].mxu0
        %1099 = vmatprep.mubr.f32.mxu0 0.0
        %1100 = vmatmul.mubr.f32.gmra.mrb[0].mxu0 %v936
        %v1101 = vpop.f32.mrb[0].mxu0
        %v1102 = vadd.f32 %v958, %v1101
        %v1103 = vpop.f32.mrb[0].mxu0
        %1104 = vdwg.mxu0
        %v1105 = vadd.f32 %v1027, %v427
        %v1106 = vadd.f32 %v1032, %v432
        %v1107 = vadd.f32 %v1037, %v437
        %v1108 = vadd.f32 %v1042, %v442
        %v1109 = vadd.f32 %v1047, %v447
        %v1110 = vadd.f32 %v1052, %v452
        %v1111 = vadd.f32 %v1057, %v457
        %v1112 = vadd.f32 %v1062, %v462
        %v1113 = vadd.f32 %v1067, %v467
        %v1114 = vadd.f32 %v1072, %v472
        %v1115 = vadd.f32 %v1077, %v477
        %v1116 = vadd.f32 %v1082, %v482
        %v1117 = vadd.f32 %v1087, %v487
        %v1118 = vadd.f32 %v1092, %v492
        %v1119 = vadd.f32 %v1097, %v497
        %v1120 = vadd.f32 %v1102, %v502
        %1121 = vadd.xlane.f32.xlu0 %v1105
        %v1122 = vpop.xlane.xlu0 %1121
        %1123 = vadd.xlane.f32.xlu0 %v1106
        %v1124 = vpop.xlane.xlu0 %1123
        %1125 = vadd.xlane.f32.xlu0 %v1107
        %v1126 = vpop.xlane.xlu0 %1125
        %1127 = vadd.xlane.f32.xlu0 %v1108
        %v1128 = vpop.xlane.xlu0 %1127
        %1129 = vadd.xlane.f32.xlu0 %v1109
        %v1130 = vpop.xlane.xlu0 %1129
        %1131 = vadd.xlane.f32.xlu0 %v1110
        %v1132 = vpop.xlane.xlu0 %1131
        %1133 = vadd.xlane.f32.xlu0 %v1111
        %v1134 = vpop.xlane.xlu0 %1133
        %1135 = vadd.xlane.f32.xlu0 %v1112
        %v1136 = vpop.xlane.xlu0 %1135
        %1137 = vadd.xlane.f32.xlu0 %v1113
        %v1138 = vpop.xlane.xlu0 %1137
        %1139 = vadd.xlane.f32.xlu0 %v1114
        %v1140 = vpop.xlane.xlu0 %1139
        %1141 = vadd.xlane.f32.xlu0 %v1115
        %v1142 = vpop.xlane.xlu0 %1141
        %1143 = vadd.xlane.f32.xlu0 %v1116
        %v1144 = vpop.xlane.xlu0 %1143
        %1145 = vadd.xlane.f32.xlu0 %v1117
        %v1146 = vpop.xlane.xlu0 %1145
        %1147 = vadd.xlane.f32.xlu0 %v1118
        %v1148 = vpop.xlane.xlu0 %1147
        %1149 = vadd.xlane.f32.xlu0 %v1119
        %v1150 = vpop.xlane.xlu0 %1149
        %1151 = vadd.xlane.f32.xlu0 %v1120
        %v1152 = vpop.xlane.xlu0 %1151
        %v1153 = vrcp.pop 128.0
        %v1154 = vmul.f32 %v1122, %v1153
        %v1155 = vmul.f32 %v1124, %v1153
        %v1156 = vmul.f32 %v1126, %v1153
        %v1157 = vmul.f32 %v1128, %v1153
        %v1158 = vmul.f32 %v1130, %v1153
        %v1159 = vmul.f32 %v1132, %v1153
        %v1160 = vmul.f32 %v1134, %v1153
        %v1161 = vmul.f32 %v1136, %v1153
        %v1162 = vmul.f32 %v1138, %v1153
        %v1163 = vmul.f32 %v1140, %v1153
        %v1164 = vmul.f32 %v1142, %v1153
        %v1165 = vmul.f32 %v1144, %v1153
        %v1166 = vmul.f32 %v1146, %v1153
        %v1167 = vmul.f32 %v1148, %v1153
        %v1168 = vmul.f32 %v1150, %v1153
        %v1169 = vmul.f32 %v1152, %v1153
        %v1170 = vsub.f32 %v1105, %v1154
        %v1171 = vsub.f32 %v1106, %v1155
        %v1172 = vsub.f32 %v1107, %v1156
        %v1173 = vsub.f32 %v1108, %v1157
        %v1174 = vsub.f32 %v1109, %v1158
        %v1175 = vsub.f32 %v1110, %v1159
        %v1176 = vsub.f32 %v1111, %v1160
        %v1177 = vsub.f32 %v1112, %v1161
        %v1178 = vsub.f32 %v1113, %v1162
        %v1179 = vsub.f32 %v1114, %v1163
        %v1180 = vsub.f32 %v1115, %v1164
        %v1181 = vsub.f32 %v1116, %v1165
        %v1182 = vsub.f32 %v1117, %v1166
        %v1183 = vsub.f32 %v1118, %v1167
        %v1184 = vsub.f32 %v1119, %v1168
        %v1185 = vsub.f32 %v1120, %v1169
        %v1186 = vmul.f32 %v1170, %v1170
        %v1187 = vmul.f32 %v1171, %v1171
        %v1188 = vmul.f32 %v1172, %v1172
        %v1189 = vmul.f32 %v1173, %v1173
        %v1190 = vmul.f32 %v1174, %v1174
        %v1191 = vmul.f32 %v1175, %v1175
        %v1192 = vmul.f32 %v1176, %v1176
        %v1193 = vmul.f32 %v1177, %v1177
        %v1194 = vmul.f32 %v1178, %v1178
        %v1195 = vmul.f32 %v1179, %v1179
        %v1196 = vmul.f32 %v1180, %v1180
        %v1197 = vmul.f32 %v1181, %v1181
        %v1198 = vmul.f32 %v1182, %v1182
        %v1199 = vmul.f32 %v1183, %v1183
        %v1200 = vmul.f32 %v1184, %v1184
        %v1201 = vmul.f32 %v1185, %v1185
        %1202 = vadd.xlane.f32.xlu0 %v1186
        %v1203 = vpop.xlane.xlu0 %1202
        %1204 = vadd.xlane.f32.xlu0 %v1187
        %v1205 = vpop.xlane.xlu0 %1204
        %1206 = vadd.xlane.f32.xlu0 %v1188
        %v1207 = vpop.xlane.xlu0 %1206
        %1208 = vadd.xlane.f32.xlu0 %v1189
        %v1209 = vpop.xlane.xlu0 %1208
        %1210 = vadd.xlane.f32.xlu0 %v1190
        %v1211 = vpop.xlane.xlu0 %1210
        %1212 = vadd.xlane.f32.xlu0 %v1191
        %v1213 = vpop.xlane.xlu0 %1212
        %1214 = vadd.xlane.f32.xlu0 %v1192
        %v1215 = vpop.xlane.xlu0 %1214
        %1216 = vadd.xlane.f32.xlu0 %v1193
        %v1217 = vpop.xlane.xlu0 %1216
        %1218 = vadd.xlane.f32.xlu0 %v1194
        %v1219 = vpop.xlane.xlu0 %1218
        %1220 = vadd.xlane.f32.xlu0 %v1195
        %v1221 = vpop.xlane.xlu0 %1220
        %1222 = vadd.xlane.f32.xlu0 %v1196
        %v1223 = vpop.xlane.xlu0 %1222
        %1224 = vadd.xlane.f32.xlu0 %v1197
        %v1225 = vpop.xlane.xlu0 %1224
        %1226 = vadd.xlane.f32.xlu0 %v1198
        %v1227 = vpop.xlane.xlu0 %1226
        %1228 = vadd.xlane.f32.xlu0 %v1199
        %v1229 = vpop.xlane.xlu0 %1228
        %1230 = vadd.xlane.f32.xlu0 %v1200
        %v1231 = vpop.xlane.xlu0 %1230
        %1232 = vadd.xlane.f32.xlu0 %v1201
        %v1233 = vpop.xlane.xlu0 %1232
        %v1234 = vmul.f32 %v1203, %v1153
        %v1235 = vmul.f32 %v1205, %v1153
        %v1236 = vmul.f32 %v1207, %v1153
        %v1237 = vmul.f32 %v1209, %v1153
        %v1238 = vmul.f32 %v1211, %v1153
        %v1239 = vmul.f32 %v1213, %v1153
        %v1240 = vmul.f32 %v1215, %v1153
        %v1241 = vmul.f32 %v1217, %v1153
        %v1242 = vmul.f32 %v1219, %v1153
        %v1243 = vmul.f32 %v1221, %v1153
        %v1244 = vmul.f32 %v1223, %v1153
        %v1245 = vmul.f32 %v1225, %v1153
        %v1246 = vmul.f32 %v1227, %v1153
        %v1247 = vmul.f32 %v1229, %v1153
        %v1248 = vmul.f32 %v1231, %v1153
        %v1249 = vmul.f32 %v1233, %v1153
        %v1250 = vadd.f32 %v1234, 1e-05
        %v1251 = vadd.f32 %v1235, 1e-05
        %v1252 = vadd.f32 %v1236, 1e-05
        %v1253 = vadd.f32 %v1237, 1e-05
        %v1254 = vadd.f32 %v1238, 1e-05
        %v1255 = vadd.f32 %v1239, 1e-05
        %v1256 = vadd.f32 %v1240, 1e-05
        %v1257 = vadd.f32 %v1241, 1e-05
        %v1258 = vadd.f32 %v1242, 1e-05
        %v1259 = vadd.f32 %v1243, 1e-05
        %v1260 = vadd.f32 %v1244, 1e-05
        %v1261 = vadd.f32 %v1245, 1e-05
        %v1262 = vadd.f32 %v1246, 1e-05
        %v1263 = vadd.f32 %v1247, 1e-05
        %v1264 = vadd.f32 %v1248, 1e-05
        %v1265 = vadd.f32 %v1249, 1e-05
        %v1266 = vrsqrt.pop %v1250
        %v1267 = vrsqrt.pop %v1251
        %v1268 = vrsqrt.pop %v1252
        %v1269 = vrsqrt.pop %v1253
        %v1270 = vrsqrt.pop %v1254
        %v1271 = vrsqrt.pop %v1255
        %v1272 = vrsqrt.pop %v1256
        %v1273 = vrsqrt.pop %v1257
        %v1274 = vrsqrt.pop %v1258
        %v1275 = vrsqrt.pop %v1259
        %v1276 = vrsqrt.pop %v1260
        %v1277 = vrsqrt.pop %v1261
        %v1278 = vrsqrt.pop %v1262
        %v1279 = vrsqrt.pop %v1263
        %v1280 = vrsqrt.pop %v1264
        %v1281 = vrsqrt.pop %v1265
        %v1282 = vmul.f32 %v1170, %v1266
        %v1283 = vmul.f32 %v1171, %v1267
        %v1284 = vmul.f32 %v1172, %v1268
        %v1285 = vmul.f32 %v1173, %v1269
        %v1286 = vmul.f32 %v1174, %v1270
        %v1287 = vmul.f32 %v1175, %v1271
        %v1288 = vmul.f32 %v1176, %v1272
        %v1289 = vmul.f32 %v1177, %v1273
        %v1290 = vmul.f32 %v1178, %v1274
        %v1291 = vmul.f32 %v1179, %v1275
        %v1292 = vmul.f32 %v1180, %v1276
        %v1293 = vmul.f32 %v1181, %v1277
        %v1294 = vmul.f32 %v1182, %v1278
        %v1295 = vmul.f32 %v1183, %v1279
        %v1296 = vmul.f32 %v1184, %v1280
        %v1297 = vmul.f32 %v1185, %v1281
        %v1298 = vld [vmem:[%s5] sm:$0x1]
        %v1300 = vlaneseq
        %v1301 = vshrl.u32 %v1300, 7
        %v1302 = vsub.s32 0, %v1301
        %v1303 = vrot.slane %v1298, %v1302
        %v1305 = vmul.f32 %v1282, %v1303
        %v1306 = vmul.f32 %v1283, %v1303
        %v1307 = vmul.f32 %v1284, %v1303
        %v1308 = vmul.f32 %v1285, %v1303
        %v1309 = vmul.f32 %v1286, %v1303
        %v1310 = vmul.f32 %v1287, %v1303
        %v1311 = vmul.f32 %v1288, %v1303
        %v1312 = vmul.f32 %v1289, %v1303
        %v1313 = vmul.f32 %v1290, %v1303
        %v1314 = vmul.f32 %v1291, %v1303
        %v1315 = vmul.f32 %v1292, %v1303
        %v1316 = vmul.f32 %v1293, %v1303
        %v1317 = vmul.f32 %v1294, %v1303
        %v1318 = vmul.f32 %v1295, %v1303
        %v1319 = vmul.f32 %v1296, %v1303
        %v1320 = vmul.f32 %v1297, %v1303
        %v1321 = vld [vmem:[%s6] sm:$0x1]
        %v1323 = vlaneseq
        %v1324 = vshrl.u32 %v1323, 7
        %v1325 = vsub.s32 0, %v1324
        %v1326 = vrot.slane %v1321, %v1325
        %v1328 = vadd.f32 %v1305, %v1326
        %v1329 = vadd.f32 %v1306, %v1326
        %v1330 = vadd.f32 %v1307, %v1326
        %v1331 = vadd.f32 %v1308, %v1326
        %v1332 = vadd.f32 %v1309, %v1326
        %v1333 = vadd.f32 %v1310, %v1326
        %v1334 = vadd.f32 %v1311, %v1326
        %v1335 = vadd.f32 %v1312, %v1326
        %v1336 = vadd.f32 %v1313, %v1326
        %v1337 = vadd.f32 %v1314, %v1326
        %v1338 = vadd.f32 %v1315, %v1326
        %v1339 = vadd.f32 %v1316, %v1326
        %v1340 = vadd.f32 %v1317, %v1326
        %v1341 = vadd.f32 %v1318, %v1326
        %v1342 = vadd.f32 %v1319, %v1326
        %v1343 = vadd.f32 %v1320, %v1326
        %1344 = vst [vmem:[%s272] sm:$0xff] %v1328
        %1345 = vst [vmem:[%s272 + $0x8] sm:$0xff] %v1329
        %1346 = vst [vmem:[%s272 + $0x10] sm:$0xff] %v1330
        %1347 = vst [vmem:[%s272 + $0x18] sm:$0xff] %v1331
        %1348 = vst [vmem:[%s272 + $0x20] sm:$0xff] %v1332
        %1349 = vst [vmem:[%s272 + $0x28] sm:$0xff] %v1333
        %1350 = vst [vmem:[%s272 + $0x30] sm:$0xff] %v1334
        %1351 = vst [vmem:[%s272 + $0x38] sm:$0xff] %v1335
        %1352 = vst [vmem:[%s272 + $0x40] sm:$0xff] %v1336
        %1353 = vst [vmem:[%s272 + $0x48] sm:$0xff] %v1337
        %1354 = vst [vmem:[%s272 + $0x50] sm:$0xff] %v1338
        %1355 = vst [vmem:[%s272 + $0x58] sm:$0xff] %v1339
        %1356 = vst [vmem:[%s272 + $0x60] sm:$0xff] %v1340
        %1357 = vst [vmem:[%s272 + $0x68] sm:$0xff] %v1341
        %1358 = vst [vmem:[%s272 + $0x70] sm:$0xff] %v1342
        %1359 = vst [vmem:[%s272 + $0x78] sm:$0xff] %v1343
        %s1360 = sand.u32 %s181, 1
        %s1361 = scalar_lea.sflag [#allocation3], %s1360
        %s1362 = sand.u32 %s181, 1
        %s1363 = smul.addr %s1362, 128
        %s1364 = scalar_lea.vmem [#allocation2], %s1363
        // Predicated region
        $region49: #{tpu_custom_call.1} parent=47 // pred_check
          %p1365 = pneg %p191
        $region50: #{tpu_custom_call.1} parent=47 // pred_check_branch
          %1367 = sbr.rel (%p1365) target = $region52
        $region51: #{tpu_custom_call.1} parent=47 // pred_region
          %s1368 = smul.u32 16, %s21
          %s1370 = ssub.s32 2048, 2048
          %1371 = vsyncadd %s1361, %s1370
          %s1372 = smul.addr %s1368, 128
          %s1373 = scalar_lea.hbm %s7, %s1372
          %s1374 = sshll.u32 %s1364, 4
          %s1375 = int_to_ptr.vmem [resolvable:$true] %s1374
          %1380 = dma.vmem_to_hbm [thread:$0]  %s1375, 2048, %s1373, %s1361, 128, 128, 8
        $region52: #{tpu_custom_call.1} parent=47 // pred_fallthru
          _
      $region48: #{tpu_custom_call.1} parent=5 // pred_fallthru
        _
      %p1381 = scmp.le.s32.totalorder 2, %s16
      // Predicated region
      $region53: #{tpu_custom_call.1} parent=5 // pred_check
        %p1382 = pneg %p1381
      $region54: #{tpu_custom_call.1} parent=5 // pred_check_branch
        %1384 = sbr.rel (%p1382) target = $region56
      $region55: #{tpu_custom_call.1} parent=5 // pred_region
        %s1385 = ssub.s32 %s16, 2
        // Predicated region
        $region57: #{tpu_custom_call.1} parent=55 // pred_check
          %p1386 = pneg %p197
        $region58: #{tpu_custom_call.1} parent=55 // pred_check_branch
          %1388 = sbr.rel (%p1386) target = $region60
        $region59: #{tpu_custom_call.1} parent=55 // pred_region
          %s1389 = sand.u32 %s182, 1
          %s1390 = scalar_lea.sflag [#allocation3], %s1389
          %s1391 = sand.u32 %s182, 1
          %s1392 = smul.addr %s1391, 128
          %s1393 = scalar_lea.vmem [#allocation2], %s1392
          %1394 = dma.done %s1390, 2048
        $region60: #{tpu_custom_call.1} parent=55 // pred_fallthru
          _
      $region56: #{tpu_custom_call.1} parent=5 // pred_fallthru
        _
    $region6: #{tpu_custom_call.1} parent=1 // loop_footer
      %s20 = sadd.s32 1, %s16
    $region7: #{tpu_custom_call.1} parent=1 // loop_footer_branch
      %15 = sbr.rel target = $region3
    $region8: #{tpu_custom_call.1} parent=1 // loop_exit
      _
    %1395 = vsyncpa [#allocation3], 1
    %s1396 = scalar_lea.sflag [#allocation3], 1
    %1397 = vsyncpa %s1396, 1

</llo_original>
